<compile_context>
chip_gen: v7x
topology: tpu7x:2x2x1
jax: 0.10.0
libtpu: 0.0.40
codegen_flags: <defaults>
</compile_context>

<pallas_src>
import math

import jax
import jax.numpy as jnp
from jax.experimental import pallas as pl
from jax.experimental.pallas import tpu as pltpu


def spatial_attention_kernel(q_ref, k_ref, v_ref,
                             wq_ref, wk_ref, wv_ref,
                             bq_ref, bk_ref, bv_ref,
                             out_ref, score_ref):
    # q/k/v/out refs: (b_tile, c, hw); w* refs: (c, c) in the MXU operand dtype;
    # b* refs: (c, 1) f32; score_ref: (c, b_tile*c) lane-dense f32 slab.
    b_tile, c, hw = q_ref.shape
    scale = 1.0 / math.sqrt(float(hw))     # dk = sqrt(h*w)
    cdt = q_ref.dtype                      # MXU operand dtype (f32 or bf16)

    # Hoist weight/bias loads out of the per-batch loop.
    wq_w, wk_w, wv_w = wq_ref[...], wk_ref[...], wv_ref[...]
    bq, bk, bv = bq_ref[...], bk_ref[...], bv_ref[...]

    # Static unrolled loop over the batches in this tile (b_tile is kept small
    # by the wrapper's tile chooser so unrolling does not blow vreg pressure).
    # TODO(synk): for b_tile in the tens, switch to lax.fori_loop(unroll=2..4)
    # with pl.ds lane windows to bound live ranges.
    for t in range(b_tile):
        # 1x1-conv projections for batch t: channel-mixing MXU matmuls with f32
        # accumulation and f32 bias broadcast, cast once to the MXU operand dtype.
        wq = (jnp.dot(wq_w, q_ref[t], preferred_element_type=jnp.float32) + bq).astype(cdt)
        wk = (jnp.dot(wk_w, k_ref[t], preferred_element_type=jnp.float32) + bk).astype(cdt)
        wv = (jnp.dot(wv_w, v_ref[t], preferred_element_type=jnp.float32) + bv).astype(cdt)

        # channel-channel similarity: contract both operands on their last (lane)
        # axis -> (c, c); avoids routing wk through an explicit transpose.
        # TODO(synk): if c << 128 in production, pack several batches block-diagonally
        # along sublanes (or compute sim on the VPU) — a 4x4 MXU output is mostly idle.
        sim = jax.lax.dot_general(
            wq, wk, (((1,), (1,)), ((), ())),
            preferred_element_type=jnp.float32) * scale

        # numerically-stable softmax over the last axis (torch.softmax(dim=-1)), f32,
        # exact divide so returned score rows sum to 1.
        m = jnp.max(sim, axis=-1, keepdims=True)
        e = jnp.exp(sim - m)
        score = e / jnp.sum(e, axis=-1, keepdims=True)

        # weighted values: (c, c) @ (c, hw) -> (c, hw), f32 accumulation.
        out_ref[t] = jnp.dot(score.astype(cdt), wv,
                             preferred_element_type=jnp.float32).astype(out_ref.dtype)

        # Pack this batch's score into the lane-dense slab (dense HBM writeback
        # even when c < 128).
        score_ref[:, t * c:(t + 1) * c] = score.astype(score_ref.dtype)


def _vmem_capacity_bytes():
    """Physical VMEM of the current TPU generation (conservative v7x fallback)."""
    try:
        cap = getattr(pltpu.get_tpu_info(), "vmem_capacity_bytes", None)
        if cap:
            return int(cap)
    except Exception:
        pass
    return 64 * 1024 * 1024


def _pick_b_tile(b, c, hw, in_itemsize, budget_bytes, max_unroll=16):
    """Largest divisor of b (capped for unroll sanity) whose per-step VMEM footprint
    (double-buffered pipeline blocks + in-kernel intermediates) fits budget_bytes,
    preferring nblk >= 2 (keeps both v7x TensorCores busy) and an even grid length."""
    def need(bt):
        blk_in = 3 * bt * c * hw * in_itemsize          # q/k/v blocks
        blk_out = bt * c * hw * 4                       # f32 out block
        blk_score = bt * c * c * 4                      # f32 lane-dense score slab
        pipeline = 2 * (blk_in + blk_out + blk_score)   # x2 double-buffering
        weights = 2 * (3 * c * c * in_itemsize + 3 * c * 4)
        # per-batch in-kernel temporaries (wq/wk/wv/out_t + sim/e/score)
        scratch = 4 * c * hw * 4 + 4 * c * c * 4
        return pipeline + weights + scratch

    cap = min(b, max_unroll)
    fits = [d for d in range(1, cap + 1) if b % d == 0 and need(d) <= budget_bytes]
    if not fits:
        return 1
    multi = [d for d in fits if (b // d) >= 2] or fits   # keep >= 2 grid steps if possible
    even = [d for d in multi if (b // d) % 2 == 0]
    return max(even) if even else max(multi)


def spatial_attention(q, k, v, params, *, matmul_dtype=jnp.bfloat16, b_tile=None):
    """q, k, v: (b, c, h, w) float32.

    Returns (weighted_score (b, c, h, w) f32, score (b, c, c) f32).
    matmul_dtype: dtype of the MXU operands (jnp.bfloat16 or jnp.float32);
    accumulation, softmax and both outputs are always f32.
    """
    Wq, bq, Wk, bk, Wv, bv = params
    b, c, h, w = q.shape
    hw = h * w
    in_itemsize = jnp.dtype(matmul_dtype).itemsize

    # Generation-aware VMEM budgeting (128 MiB on v5e/v6e, 64 MiB on v7x).
    vmem_cap = _vmem_capacity_bytes()
    vmem_limit = min((vmem_cap * 3) // 4, 96 * 1024 * 1024)
    if b_tile is None:
        b_tile = _pick_b_tile(b, c, hw, in_itemsize, budget_bytes=vmem_limit // 2)
    assert b % b_tile == 0, "b_tile must divide the batch size"
    nblk = b // b_tile

    # Pure reshapes only — no host-side transposes of q/k/v or the output.
    q3 = q.reshape(b, c, hw).astype(matmul_dtype)
    k3 = k.reshape(b, c, hw).astype(matmul_dtype)
    v3 = v.reshape(b, c, hw).astype(matmul_dtype)
    Wq_, Wk_, Wv_ = (Wq.astype(matmul_dtype), Wk.astype(matmul_dtype), Wv.astype(matmul_dtype))
    bq2 = bq.reshape(c, 1).astype(jnp.float32)
    bk2 = bk.reshape(c, 1).astype(jnp.float32)
    bv2 = bv.reshape(c, 1).astype(jnp.float32)

    batch_spec = pl.BlockSpec((b_tile, c, hw), lambda i: (i, 0, 0))
    weight_spec = pl.BlockSpec((c, c), lambda i: (0, 0))
    bias_spec = pl.BlockSpec((c, 1), lambda i: (0, 0))

    flops = 10 * b * c * c * hw                 # 3 projections + sim + score@wv
    transcendentals = b * c * c                 # exp per batch
    bytes_accessed = (3 * b * c * hw * in_itemsize      # q/k/v reads
                      + b * c * hw * 4                  # weighted_score write (f32)
                      + b * c * c * 4                   # score write (f32)
                      + 3 * c * c * in_itemsize + 3 * c * 4)   # weights + biases

    out3, score_slab = pl.pallas_call(
        spatial_attention_kernel,
        out_shape=(jax.ShapeDtypeStruct((b, c, hw), jnp.float32),
                   jax.ShapeDtypeStruct((nblk, c, b_tile * c), jnp.float32)),
        grid=(nblk,),
        in_specs=[batch_spec, batch_spec, batch_spec,
                  weight_spec, weight_spec, weight_spec,
                  bias_spec, bias_spec, bias_spec],
        out_specs=(pl.BlockSpec((b_tile, c, hw), lambda i: (i, 0, 0)),
                   pl.BlockSpec((None, c, b_tile * c), lambda i: (i, 0, 0))),
        compiler_params=pltpu.CompilerParams(
            dimension_semantics=("parallel",),
            vmem_limit_bytes=int(vmem_limit)),
        cost_estimate=pl.CostEstimate(flops=flops,
                                      transcendentals=transcendentals,
                                      bytes_accessed=bytes_accessed),
    )(q3, k3, v3, Wq_, Wk_, Wv_, bq2, bk2, bv2)

    out = out3.reshape(b, c, h, w)              # free reshape, no transpose
    score = (score_slab.reshape(nblk, c, b_tile, c)
             .transpose(0, 2, 1, 3)
             .reshape(b, c, c))                 # tiny (b*c*c) un-slab on host
    return out, score


def init_params(key, num_units):
    """Deterministic init mirroring nn.Conv2d(num_units, num_units, 1) shapes.

    Conv2d weight (out, in, 1, 1) collapses to a (out, in) matrix; bias (out,).
    Uses U(-1/sqrt(fan_in), 1/sqrt(fan_in)) like PyTorch's default.
    """
    bound = 1.0 / math.sqrt(num_units)
    keys = jax.random.split(key, 6)
    Wq = jax.random.uniform(keys[0], (num_units, num_units), jnp.float32, -bound, bound)
    bq = jax.random.uniform(keys[1], (num_units,), jnp.float32, -bound, bound)
    Wk = jax.random.uniform(keys[2], (num_units, num_units), jnp.float32, -bound, bound)
    bk = jax.random.uniform(keys[3], (num_units,), jnp.float32, -bound, bound)
    Wv = jax.random.uniform(keys[4], (num_units, num_units), jnp.float32, -bound, bound)
    bv = jax.random.uniform(keys[5], (num_units,), jnp.float32, -bound, bound)
    return (Wq, bq, Wk, bk, Wv, bv)


def _reference(q, k, v, params):
    """Pure-JAX reference of the PyTorch forward, for verification."""
    Wq, bq, Wk, bk, Wv, bv = params
    b, c, h, w = q.shape
    hw = h * w
    proj = lambda W, bias, x: jnp.einsum('oc,bcs->bos', W, x.reshape(b, c, hw)) + bias[None, :, None]
    wq = proj(Wq, bq, q)                       # (b, c, hw)
    wk = proj(Wk, bk, k)                       # (b, c, hw)
    wv = proj(Wv, bv, v)                       # (b, c, hw)
    sim = jnp.einsum('bcs,bds->bcd', wq, wk) / math.sqrt(hw)
    score = jax.nn.softmax(sim, axis=-1)
    out = jnp.einsum('bcd,bds->bcs', score, wv).reshape(b, c, h, w)
    return out, score


if __name__ == "__main__":
    key = jax.random.PRNGKey(0)
    k_params, k_q, k_k, k_v = jax.random.split(key, 4)

    b, c, h, w = 4, 4, 16, 16
    params = init_params(k_params, c)
    q = jax.random.normal(k_q, (b, c, h, w), jnp.float32)
    k = jax.random.normal(k_k, (b, c, h, w), jnp.float32)
    v = jax.random.normal(k_v, (b, c, h, w), jnp.float32)

    ref_out, ref_score = _reference(q, k, v, params)

    # f32 MXU operands: tight check against the pure-JAX reference.
    out, score = spatial_attention(q, k, v, params, matmul_dtype=jnp.float32)
    jax.block_until_ready((out, score))
    assert out.shape == (b, c, h, w) and score.shape == (b, c, c)
    assert jnp.allclose(out, ref_out, atol=1e-2, rtol=1e-2)
    assert jnp.allclose(score, ref_score, atol=1e-2, rtol=1e-2)

    # Default path: bf16 MXU operands, f32 accumulation + f32 softmax (HBM-bound win).
    out_bf, score_bf = spatial_attention(q, k, v, params)
    jax.block_until_ready((out_bf, score_bf))
    assert out_bf.shape == (b, c, h, w) and score_bf.shape == (b, c, c)
    assert jnp.allclose(out_bf, ref_out, atol=6e-2, rtol=6e-2)
    assert jnp.allclose(score_bf, ref_score, atol=4e-2, rtol=4e-2)

    print("KERNEL_OK")
</pallas_src>

<mosaic_0001>
module attributes {stable_mosaic.version = 11 : i64} {
  func.func @spatial_attention_kernel(%arg0: i32, %arg1: memref<2x4x256xf32, #tpu.memory_space<vmem>>, %arg2: memref<2x4x256xf32, #tpu.memory_space<vmem>>, %arg3: memref<2x4x256xf32, #tpu.memory_space<vmem>>, %arg4: memref<4x4xf32, #tpu.memory_space<vmem>>, %arg5: memref<4x4xf32, #tpu.memory_space<vmem>>, %arg6: memref<4x4xf32, #tpu.memory_space<vmem>>, %arg7: memref<4x1xf32, #tpu.memory_space<vmem>>, %arg8: memref<4x1xf32, #tpu.memory_space<vmem>>, %arg9: memref<4x1xf32, #tpu.memory_space<vmem>>, %arg10: memref<2x4x256xf32, #tpu.memory_space<vmem>>, %arg11: memref<1x4x8xf32, #tpu.memory_space<vmem>>) attributes {dimension_semantics = [#tpu.dimension_semantics<parallel>], iteration_bounds = array<i64: 2>, scalar_prefetch = 0 : i64, scratch_operands = 0 : i64, tpu.core_type = #tpu.core_type<tc>, window_params = [{transform_indices = @transform_0, window_bounds = array<i64: 2, 4, 256>}, {transform_indices = @transform_1, window_bounds = array<i64: 2, 4, 256>}, {transform_indices = @transform_2, window_bounds = array<i64: 2, 4, 256>}, {pipeline_mode = #tpu.pipeline_mode<synchronous>, transform_indices = @transform_3, window_bounds = array<i64: 4, 4>}, {pipeline_mode = #tpu.pipeline_mode<synchronous>, transform_indices = @transform_4, window_bounds = array<i64: 4, 4>}, {pipeline_mode = #tpu.pipeline_mode<synchronous>, transform_indices = @transform_5, window_bounds = array<i64: 4, 4>}, {pipeline_mode = #tpu.pipeline_mode<synchronous>, transform_indices = @transform_6, window_bounds = array<i64: 4, 1>}, {pipeline_mode = #tpu.pipeline_mode<synchronous>, transform_indices = @transform_7, window_bounds = array<i64: 4, 1>}, {pipeline_mode = #tpu.pipeline_mode<synchronous>, transform_indices = @transform_8, window_bounds = array<i64: 4, 1>}, {transform_indices = @transform_9, window_bounds = array<i64: 2, 4, 256>}, {transform_indices = @transform_10, window_bounds = array<i64: 1, 4, 8>}]} {
    %c0 = arith.constant 0 : index
    %c0_0 = arith.constant 0 : index
    %0 = vector.load %arg4[%c0, %c0_0] : memref<4x4xf32, #tpu.memory_space<vmem>>, vector<4x4xf32>
    %c0_1 = arith.constant 0 : index
    %c0_2 = arith.constant 0 : index
    %1 = vector.load %arg5[%c0_1, %c0_2] : memref<4x4xf32, #tpu.memory_space<vmem>>, vector<4x4xf32>
    %c0_3 = arith.constant 0 : index
    %c0_4 = arith.constant 0 : index
    %2 = vector.load %arg6[%c0_3, %c0_4] : memref<4x4xf32, #tpu.memory_space<vmem>>, vector<4x4xf32>
    %c0_5 = arith.constant 0 : index
    %c0_6 = arith.constant 0 : index
    %3 = vector.load %arg7[%c0_5, %c0_6] : memref<4x1xf32, #tpu.memory_space<vmem>>, vector<4x1xf32>
    %c0_7 = arith.constant 0 : index
    %c0_8 = arith.constant 0 : index
    %4 = vector.load %arg8[%c0_7, %c0_8] : memref<4x1xf32, #tpu.memory_space<vmem>>, vector<4x1xf32>
    %c0_9 = arith.constant 0 : index
    %c0_10 = arith.constant 0 : index
    %5 = vector.load %arg9[%c0_9, %c0_10] : memref<4x1xf32, #tpu.memory_space<vmem>>, vector<4x1xf32>
    %c0_11 = arith.constant 0 : index
    %c0_12 = arith.constant 0 : index
    %c0_13 = arith.constant 0 : index
    %6 = vector.load %arg1[%c0_11, %c0_12, %c0_13] : memref<2x4x256xf32, #tpu.memory_space<vmem>>, vector<1x4x256xf32>
    %7 = vector.shape_cast %6 : vector<1x4x256xf32> to vector<4x256xf32>
    %cst = arith.constant dense<0.000000e+00> : vector<4x256xf32>
    %8 = tpu.matmul %0, %7, %cst {dimension_numbers = #tpu.dot_dimension_numbers<[1], [0], [0], [1], [0, 0, 1, 1], [], []>} : vector<4x4xf32>, vector<4x256xf32>, vector<4x256xf32> -> vector<4x256xf32>
    %9 = vector.broadcast %3 : vector<4x1xf32> to vector<4x256xf32>
    %10 = arith.addf %8, %9 : vector<4x256xf32>
    %c0_14 = arith.constant 0 : index
    %c0_15 = arith.constant 0 : index
    %c0_16 = arith.constant 0 : index
    %11 = vector.load %arg2[%c0_14, %c0_15, %c0_16] : memref<2x4x256xf32, #tpu.memory_space<vmem>>, vector<1x4x256xf32>
    %12 = vector.shape_cast %11 : vector<1x4x256xf32> to vector<4x256xf32>
    %cst_17 = arith.constant dense<0.000000e+00> : vector<4x256xf32>
    %13 = tpu.matmul %1, %12, %cst_17 {dimension_numbers = #tpu.dot_dimension_numbers<[1], [0], [0], [1], [0, 0, 1, 1], [], []>} : vector<4x4xf32>, vector<4x256xf32>, vector<4x256xf32> -> vector<4x256xf32>
    %14 = vector.broadcast %4 : vector<4x1xf32> to vector<4x256xf32>
    %15 = arith.addf %13, %14 : vector<4x256xf32>
    %c0_18 = arith.constant 0 : index
    %c0_19 = arith.constant 0 : index
    %c0_20 = arith.constant 0 : index
    %16 = vector.load %arg3[%c0_18, %c0_19, %c0_20] : memref<2x4x256xf32, #tpu.memory_space<vmem>>, vector<1x4x256xf32>
    %17 = vector.shape_cast %16 : vector<1x4x256xf32> to vector<4x256xf32>
    %cst_21 = arith.constant dense<0.000000e+00> : vector<4x256xf32>
    %18 = tpu.matmul %2, %17, %cst_21 {dimension_numbers = #tpu.dot_dimension_numbers<[1], [0], [0], [1], [0, 0, 1, 1], [], []>} : vector<4x4xf32>, vector<4x256xf32>, vector<4x256xf32> -> vector<4x256xf32>
    %19 = vector.broadcast %5 : vector<4x1xf32> to vector<4x256xf32>
    %20 = arith.addf %18, %19 : vector<4x256xf32>
    %cst_22 = arith.constant dense<0.000000e+00> : vector<4x4xf32>
    %21 = tpu.matmul %10, %15, %cst_22 {dimension_numbers = #tpu.dot_dimension_numbers<[1], [1], [0], [0], [0, 0, 1, 0], [], []>} : vector<4x256xf32>, vector<4x256xf32>, vector<4x4xf32> -> vector<4x4xf32>
    %cst_23 = arith.constant 6.250000e-02 : f32
    %22 = vector.broadcast %cst_23 : f32 to vector<4x4xf32>
    %23 = arith.mulf %21, %22 : vector<4x4xf32>
    %cst_24 = arith.constant dense<0xFF800000> : vector<4xf32>
    %24 = vector.multi_reduction <maximumf>, %23, %cst_24 [1] : vector<4x4xf32> to vector<4xf32>
    %25 = vector.shape_cast %24 : vector<4xf32> to vector<4x1xf32>
    %26 = vector.broadcast %25 : vector<4x1xf32> to vector<4x4xf32>
    %27 = arith.subf %23, %26 : vector<4x4xf32>
    %28 = math.exp %27 : vector<4x4xf32>
    %cst_25 = arith.constant dense<0.000000e+00> : vector<4xf32>
    %29 = vector.multi_reduction <add>, %28, %cst_25 [1] : vector<4x4xf32> to vector<4xf32>
    %30 = vector.shape_cast %29 : vector<4xf32> to vector<4x1xf32>
    %31 = vector.broadcast %30 : vector<4x1xf32> to vector<4x4xf32>
    %32 = arith.divf %28, %31 : vector<4x4xf32>
    %cst_26 = arith.constant dense<0.000000e+00> : vector<4x256xf32>
    %33 = tpu.matmul %32, %20, %cst_26 {dimension_numbers = #tpu.dot_dimension_numbers<[1], [0], [0], [1], [0, 0, 1, 1], [], []>} : vector<4x4xf32>, vector<4x256xf32>, vector<4x256xf32> -> vector<4x256xf32>
    %c0_27 = arith.constant 0 : index
    %c0_28 = arith.constant 0 : index
    %c0_29 = arith.constant 0 : index
    %34 = vector.load %arg10[%c0_27, %c0_28, %c0_29] : memref<2x4x256xf32, #tpu.memory_space<vmem>>, vector<1x4x256xf32>
    %35 = vector.shape_cast %34 : vector<1x4x256xf32> to vector<4x256xf32>
    %36 = vector.shape_cast %33 : vector<4x256xf32> to vector<1x4x256xf32>
    tpu.vector_store %arg10[%c0_27, %c0_28, %c0_29], %36 {strides = array<i32>} : memref<2x4x256xf32, #tpu.memory_space<vmem>>, vector<1x4x256xf32>,
    %c0_30 = arith.constant 0 : index
    %c0_31 = arith.constant 0 : index
    %c0_32 = arith.constant 0 : index
    %37 = vector.load %arg11[%c0_30, %c0_31, %c0_32] : memref<1x4x8xf32, #tpu.memory_space<vmem>>, vector<1x4x4xf32>
    %38 = vector.shape_cast %37 : vector<1x4x4xf32> to vector<4x4xf32>
    %39 = vector.shape_cast %32 : vector<4x4xf32> to vector<1x4x4xf32>
    tpu.vector_store %arg11[%c0_30, %c0_31, %c0_32], %39 {strides = array<i32>} : memref<1x4x8xf32, #tpu.memory_space<vmem>>, vector<1x4x4xf32>,
    %c1 = arith.constant 1 : index
    %c0_33 = arith.constant 0 : index
    %c0_34 = arith.constant 0 : index
    %40 = vector.load %arg1[%c1, %c0_33, %c0_34] : memref<2x4x256xf32, #tpu.memory_space<vmem>>, vector<1x4x256xf32>
    %41 = vector.shape_cast %40 : vector<1x4x256xf32> to vector<4x256xf32>
    %cst_35 = arith.constant dense<0.000000e+00> : vector<4x256xf32>
    %42 = tpu.matmul %0, %41, %cst_35 {dimension_numbers = #tpu.dot_dimension_numbers<[1], [0], [0], [1], [0, 0, 1, 1], [], []>} : vector<4x4xf32>, vector<4x256xf32>, vector<4x256xf32> -> vector<4x256xf32>
    %43 = vector.broadcast %3 : vector<4x1xf32> to vector<4x256xf32>
    %44 = arith.addf %42, %43 : vector<4x256xf32>
    %c1_36 = arith.constant 1 : index
    %c0_37 = arith.constant 0 : index
    %c0_38 = arith.constant 0 : index
    %45 = vector.load %arg2[%c1_36, %c0_37, %c0_38] : memref<2x4x256xf32, #tpu.memory_space<vmem>>, vector<1x4x256xf32>
    %46 = vector.shape_cast %45 : vector<1x4x256xf32> to vector<4x256xf32>
    %cst_39 = arith.constant dense<0.000000e+00> : vector<4x256xf32>
    %47 = tpu.matmul %1, %46, %cst_39 {dimension_numbers = #tpu.dot_dimension_numbers<[1], [0], [0], [1], [0, 0, 1, 1], [], []>} : vector<4x4xf32>, vector<4x256xf32>, vector<4x256xf32> -> vector<4x256xf32>
    %48 = vector.broadcast %4 : vector<4x1xf32> to vector<4x256xf32>
    %49 = arith.addf %47, %48 : vector<4x256xf32>
    %c1_40 = arith.constant 1 : index
    %c0_41 = arith.constant 0 : index
    %c0_42 = arith.constant 0 : index
    %50 = vector.load %arg3[%c1_40, %c0_41, %c0_42] : memref<2x4x256xf32, #tpu.memory_space<vmem>>, vector<1x4x256xf32>
    %51 = vector.shape_cast %50 : vector<1x4x256xf32> to vector<4x256xf32>
    %cst_43 = arith.constant dense<0.000000e+00> : vector<4x256xf32>
    %52 = tpu.matmul %2, %51, %cst_43 {dimension_numbers = #tpu.dot_dimension_numbers<[1], [0], [0], [1], [0, 0, 1, 1], [], []>} : vector<4x4xf32>, vector<4x256xf32>, vector<4x256xf32> -> vector<4x256xf32>
    %53 = vector.broadcast %5 : vector<4x1xf32> to vector<4x256xf32>
    %54 = arith.addf %52, %53 : vector<4x256xf32>
    %cst_44 = arith.constant dense<0.000000e+00> : vector<4x4xf32>
    %55 = tpu.matmul %44, %49, %cst_44 {dimension_numbers = #tpu.dot_dimension_numbers<[1], [1], [0], [0], [0, 0, 1, 0], [], []>} : vector<4x256xf32>, vector<4x256xf32>, vector<4x4xf32> -> vector<4x4xf32>
    %cst_45 = arith.constant 6.250000e-02 : f32
    %56 = vector.broadcast %cst_45 : f32 to vector<4x4xf32>
    %57 = arith.mulf %55, %56 : vector<4x4xf32>
    %cst_46 = arith.constant dense<0xFF800000> : vector<4xf32>
    %58 = vector.multi_reduction <maximumf>, %57, %cst_46 [1] : vector<4x4xf32> to vector<4xf32>
    %59 = vector.shape_cast %58 : vector<4xf32> to vector<4x1xf32>
    %60 = vector.broadcast %59 : vector<4x1xf32> to vector<4x4xf32>
    %61 = arith.subf %57, %60 : vector<4x4xf32>
    %62 = math.exp %61 : vector<4x4xf32>
    %cst_47 = arith.constant dense<0.000000e+00> : vector<4xf32>
    %63 = vector.multi_reduction <add>, %62, %cst_47 [1] : vector<4x4xf32> to vector<4xf32>
    %64 = vector.shape_cast %63 : vector<4xf32> to vector<4x1xf32>
    %65 = vector.broadcast %64 : vector<4x1xf32> to vector<4x4xf32>
    %66 = arith.divf %62, %65 : vector<4x4xf32>
    %cst_48 = arith.constant dense<0.000000e+00> : vector<4x256xf32>
    %67 = tpu.matmul %66, %54, %cst_48 {dimension_numbers = #tpu.dot_dimension_numbers<[1], [0], [0], [1], [0, 0, 1, 1], [], []>} : vector<4x4xf32>, vector<4x256xf32>, vector<4x256xf32> -> vector<4x256xf32>
    %c1_49 = arith.constant 1 : index
    %c0_50 = arith.constant 0 : index
    %c0_51 = arith.constant 0 : index
    %68 = vector.load %arg10[%c1_49, %c0_50, %c0_51] : memref<2x4x256xf32, #tpu.memory_space<vmem>>, vector<1x4x256xf32>
    %69 = vector.shape_cast %68 : vector<1x4x256xf32> to vector<4x256xf32>
    %70 = vector.shape_cast %67 : vector<4x256xf32> to vector<1x4x256xf32>
    tpu.vector_store %arg10[%c1_49, %c0_50, %c0_51], %70 {strides = array<i32>} : memref<2x4x256xf32, #tpu.memory_space<vmem>>, vector<1x4x256xf32>,
    %c0_52 = arith.constant 0 : index
    %c0_53 = arith.constant 0 : index
    %c4 = arith.constant 4 : index
    %71 = vector.load %arg11[%c0_52, %c0_53, %c4] : memref<1x4x8xf32, #tpu.memory_space<vmem>>, vector<1x4x4xf32>
    %72 = vector.shape_cast %71 : vector<1x4x4xf32> to vector<4x4xf32>
    %73 = vector.shape_cast %66 : vector<4x4xf32> to vector<1x4x4xf32>
    tpu.vector_store %arg11[%c0_52, %c0_53, %c4], %73 {strides = array<i32>} : memref<1x4x8xf32, #tpu.memory_space<vmem>>, vector<1x4x4xf32>,
    return
  }
  func.func @transform_0(%arg0: i32) -> (i32, i32, i32) {
    %c0_i32 = arith.constant 0 : i32
    %c0_i32_0 = arith.constant 0 : i32
    %c0_i32_1 = arith.constant 0 : i32
    return %arg0, %c0_i32, %c0_i32_0 : i32, i32, i32
  }
  func.func @transform_1(%arg0: i32) -> (i32, i32, i32) {
    %c0_i32 = arith.constant 0 : i32
    %c0_i32_0 = arith.constant 0 : i32
    %c0_i32_1 = arith.constant 0 : i32
    return %arg0, %c0_i32, %c0_i32_0 : i32, i32, i32
  }
  func.func @transform_2(%arg0: i32) -> (i32, i32, i32) {
    %c0_i32 = arith.constant 0 : i32
    %c0_i32_0 = arith.constant 0 : i32
    %c0_i32_1 = arith.constant 0 : i32
    return %arg0, %c0_i32, %c0_i32_0 : i32, i32, i32
  }
  func.func @transform_3(%arg0: i32) -> (i32, i32) {
    %c0_i32 = arith.constant 0 : i32
    %c0_i32_0 = arith.constant 0 : i32
    %c0_i32_1 = arith.constant 0 : i32
    return %c0_i32, %c0_i32_0 : i32, i32
  }
  func.func @transform_4(%arg0: i32) -> (i32, i32) {
    %c0_i32 = arith.constant 0 : i32
    %c0_i32_0 = arith.constant 0 : i32
    %c0_i32_1 = arith.constant 0 : i32
    return %c0_i32, %c0_i32_0 : i32, i32
  }
  func.func @transform_5(%arg0: i32) -> (i32, i32) {
    %c0_i32 = arith.constant 0 : i32
    %c0_i32_0 = arith.constant 0 : i32
    %c0_i32_1 = arith.constant 0 : i32
    return %c0_i32, %c0_i32_0 : i32, i32
  }
  func.func @transform_6(%arg0: i32) -> (i32, i32) {
    %c0_i32 = arith.constant 0 : i32
    %c0_i32_0 = arith.constant 0 : i32
    %c0_i32_1 = arith.constant 0 : i32
    return %c0_i32, %c0_i32_0 : i32, i32
  }
  func.func @transform_7(%arg0: i32) -> (i32, i32) {
    %c0_i32 = arith.constant 0 : i32
    %c0_i32_0 = arith.constant 0 : i32
    %c0_i32_1 = arith.constant 0 : i32
    return %c0_i32, %c0_i32_0 : i32, i32
  }
  func.func @transform_8(%arg0: i32) -> (i32, i32) {
    %c0_i32 = arith.constant 0 : i32
    %c0_i32_0 = arith.constant 0 : i32
    %c0_i32_1 = arith.constant 0 : i32
    return %c0_i32, %c0_i32_0 : i32, i32
  }
  func.func @transform_9(%arg0: i32) -> (i32, i32, i32) {
    %c0_i32 = arith.constant 0 : i32
    %c0_i32_0 = arith.constant 0 : i32
    %c0_i32_1 = arith.constant 0 : i32
    return %arg0, %c0_i32, %c0_i32_0 : i32, i32, i32
  }
  func.func @transform_10(%arg0: i32) -> (i32, i32, i32) {
    %c0_i32 = arith.constant 0 : i32
    %c0_i32_0 = arith.constant 0 : i32
    %c0_i32_1 = arith.constant 0 : i32
    return %arg0, %c0_i32, %c0_i32_0 : i32, i32, i32
  }
}

</mosaic_0001>

<llo_original>
// kernel: tpu_custom_call.1
$region0: #{tpu_custom_call.1}
  #allocation0 [shape = 'u32[]', space=smem, size = 0x4, offset = 0x4, fixed_abs, tag = 'smem constant byte address 0x4 - core index']
  #allocation1 [shape = 'u32[144,128]{1,0:T(1,128)}', space=vmem, size = 0x12000, scoped, tag = 'internal scratch']
  %s0 = inlined_call_operand.hbm [shape: f32[4,4,256], index: 0, kind: input, shape index: {}]
  %s1 = inlined_call_operand.hbm [shape: f32[4,4,256], index: 1, kind: input, shape index: {}]
  %s2 = inlined_call_operand.hbm [shape: f32[4,4,256], index: 2, kind: input, shape index: {}]
  %s3 = inlined_call_operand.vmem [shape: f32[4,4], index: 3, kind: input, shape index: {}]
  %s4 = inlined_call_operand.vmem [shape: f32[4,4], index: 4, kind: input, shape index: {}]
  %s5 = inlined_call_operand.vmem [shape: f32[4,4], index: 5, kind: input, shape index: {}]
  %s6 = inlined_call_operand.vmem [shape: f32[4,1], index: 6, kind: input, shape index: {}]
  %s7 = inlined_call_operand.vmem [shape: f32[4,1], index: 7, kind: input, shape index: {}]
  %s8 = inlined_call_operand.vmem [shape: f32[4,1], index: 8, kind: input, shape index: {}]
  %s9 = inlined_call_operand.hbm [shape: f32[4,4,256], index: 9, kind: output, shape index: {0}]
  %s10 = inlined_call_operand.hbm [shape: f32[2,4,8], index: 10, kind: output, shape index: {1}]
  %11 = xla_tuple %s9, %s10
  %s12 = sld [smem:[#allocation0]]
  $region89: #{tpu_custom_call.1} parent=0
    _
  %s14 = ssub.s32 1, %s12
  %s15 = scalar_select 0, %s14, %s12
  $region1: #{tpu_custom_call.1} parent=0
    #allocation2 [shape = 'u8[16384]{0}', space=vmem, size = 0x4000, scoped, tag = 'input window, operand 0']
    #allocation3 [shape = 's32[2]{0}', space=sflag, size = 0x8, scoped, tag = 'scoped memory for tpu_custom_call.1']
    #allocation4 [shape = 's32[2]{0}', space=sflag, size = 0x8, scoped, tag = 'scoped memory for tpu_custom_call.1']
    #allocation5 [shape = 'u8[16384]{0}', space=vmem, size = 0x4000, scoped, tag = 'input window, operand 1']
    #allocation6 [shape = 's32[2]{0}', space=sflag, size = 0x8, scoped, tag = 'scoped memory for tpu_custom_call.1']
    #allocation7 [shape = 'u8[16384]{0}', space=vmem, size = 0x4000, scoped, tag = 'input window, operand 2']
    #allocation8 [shape = 'u8[16384]{0}', space=vmem, size = 0x4000, scoped, tag = 'output window, operand 0']
    #allocation9 [shape = 'u8[4096]{0}', space=vmem, size = 0x1000, scoped, tag = 'output window, operand 1']
    #allocation10 [shape = 's32[2]{0}', space=sflag, size = 0x8, scoped, tag = 'scoped memory for tpu_custom_call.1']
    %16 = vsyncpa [#allocation3], 0
    %s17 = scalar_lea.sflag [#allocation3], 1
    %18 = vsyncpa %s17, 0
    %19 = vsyncpa [#allocation6], 0
    %s20 = scalar_lea.sflag [#allocation6], 1
    %21 = vsyncpa %s20, 0
    %22 = vsyncpa [#allocation4], 0
    %s23 = scalar_lea.sflag [#allocation4], 1
    %24 = vsyncpa %s23, 0
    %25 = vsyncpa [#allocation10], 0
    %s26 = scalar_lea.sflag [#allocation10], 1
    %27 = vsyncpa %s26, 0
    loop: start=0, step=1, limit=4
    $region2: #{tpu_custom_call.1} parent=1 // loop_pre_header
      _
    $region3: #{tpu_custom_call.1} parent=1 // loop_header
      %s29 = sphi 0, %s33
      %p30 = scmp.ge.s32.totalorder %s29, 4
      %s39 = sphi 0, %s41
      %s42 = sphi 0, %s39
      %s43 = sphi 0, %s42
      %s59 = sphi 0, %s43
      %s65 = sphi 0, %s67
      %s68 = sphi 0, %s65
      %s69 = sphi 0, %s68
      %s85 = sphi 0, %s69
      %s91 = sphi 0, %s93
      %s94 = sphi 0, %s91
      %s95 = sphi 0, %s94
      %s111 = sphi 0, %s95
      %s115 = sphi 0, %s115
      %s117 = sphi 0, %s115
      %s118 = sphi 0, %s117
      %s132 = sphi 0, %s118
      %s136 = sphi 0, %s136
      %s138 = sphi 0, %s136
      %s139 = sphi 0, %s138
      %s153 = sphi 0, %s139
      %s157 = sphi 0, %s157
      %s159 = sphi 0, %s157
      %s160 = sphi 0, %s159
      %s174 = sphi 0, %s160
      %s178 = sphi 0, %s178
      %s180 = sphi 0, %s178
      %s181 = sphi 0, %s180
      %s195 = sphi 0, %s181
      %s199 = sphi 0, %s199
      %s201 = sphi 0, %s199
      %s202 = sphi 0, %s201
      %s216 = sphi 0, %s202
      %s220 = sphi 0, %s220
      %s222 = sphi 0, %s220
      %s223 = sphi 0, %s222
      %s237 = sphi 0, %s223
      %s243 = sphi 0, %s245
      %s246 = sphi 0, %s243
      %s247 = sphi 0, %s246
      %s263 = sphi 0, %s247
      %s269 = sphi 0, %s271
      %s272 = sphi 0, %s269
      %s273 = sphi 0, %s272
      %s289 = sphi 0, %s273
    $region4: #{tpu_custom_call.1} parent=1 // loop_header_branch
      %32 = sbr.rel (%p30) target = $region8
    $region5: #{tpu_custom_call.1} parent=1 // loop_body
      %s34 = ssub.s32 %s29, 1
      %s35 = ssub.s32 %s29, 2
      %s36 = sadd.s32 %s29, 1
      %s37 = ssub.s32 %s29, %s36
      %p38 = scmp.eq.s32.totalorder %s37, 0
      %s40 = sadd.s32 %s39, 1
      %s41 = scalar_select %p38, %s39, %s40
      %p44 = pneg %p38
      %p45 = scmp.eq.s32.totalorder %s29, 1
      %p46 = por %p44, %p45
      %p47 = scmp.ne.s32.totalorder %s39, %s42
      %p48 = scmp.eq.s32.totalorder %s29, 0
      %p49 = por %p47, %p48
      %p50 = scmp.ne.s32.totalorder %s39, %s42
      %p51 = scmp.eq.s32.totalorder %s34, 1
      %p52 = por %p50, %p51
      %p53 = scmp.ne.s32.totalorder %s42, %s43
      %p54 = scmp.eq.s32.totalorder %s34, 0
      %p55 = por %p53, %p54
      %p56 = scmp.ne.s32.totalorder %s42, %s43
      %p57 = scmp.eq.s32.totalorder %s35, 1
      %p58 = por %p56, %p57
      %p60 = scmp.ne.s32.totalorder %s43, %s59
      %p61 = scmp.eq.s32.totalorder %s35, 0
      %p62 = por %p60, %p61
      %s63 = ssub.s32 %s29, %s36
      %p64 = scmp.eq.s32.totalorder %s63, 0
      %s66 = sadd.s32 %s65, 1
      %s67 = scalar_select %p64, %s65, %s66
      %p70 = pneg %p64
      %p71 = scmp.eq.s32.totalorder %s29, 1
      %p72 = por %p70, %p71
      %p73 = scmp.ne.s32.totalorder %s65, %s68
      %p74 = scmp.eq.s32.totalorder %s29, 0
      %p75 = por %p73, %p74
      %p76 = scmp.ne.s32.totalorder %s65, %s68
      %p77 = scmp.eq.s32.totalorder %s34, 1
      %p78 = por %p76, %p77
      %p79 = scmp.ne.s32.totalorder %s68, %s69
      %p80 = scmp.eq.s32.totalorder %s34, 0
      %p81 = por %p79, %p80
      %p82 = scmp.ne.s32.totalorder %s68, %s69
      %p83 = scmp.eq.s32.totalorder %s35, 1
      %p84 = por %p82, %p83
      %p86 = scmp.ne.s32.totalorder %s69, %s85
      %p87 = scmp.eq.s32.totalorder %s35, 0
      %p88 = por %p86, %p87
      %s89 = ssub.s32 %s29, %s36
      %p90 = scmp.eq.s32.totalorder %s89, 0
      %s92 = sadd.s32 %s91, 1
      %s93 = scalar_select %p90, %s91, %s92
      %p96 = pneg %p90
      %p97 = scmp.eq.s32.totalorder %s29, 1
      %p98 = por %p96, %p97
      %p99 = scmp.ne.s32.totalorder %s91, %s94
      %p100 = scmp.eq.s32.totalorder %s29, 0
      %p101 = por %p99, %p100
      %p102 = scmp.ne.s32.totalorder %s91, %s94
      %p103 = scmp.eq.s32.totalorder %s34, 1
      %p104 = por %p102, %p103
      %p105 = scmp.ne.s32.totalorder %s94, %s95
      %p106 = scmp.eq.s32.totalorder %s34, 0
      %p107 = por %p105, %p106
      %p108 = scmp.ne.s32.totalorder %s94, %s95
      %p109 = scmp.eq.s32.totalorder %s35, 1
      %p110 = por %p108, %p109
      %p112 = scmp.ne.s32.totalorder %s95, %s111
      %p113 = scmp.eq.s32.totalorder %s35, 0
      %p114 = por %p112, %p113
      %s116 = sadd.s32 %s115, 1
      %p119 = scmp.eq.s32.totalorder %s29, 1
      %p120 = scmp.ne.s32.totalorder %s115, %s117
      %p121 = scmp.eq.s32.totalorder %s29, 0
      %p122 = por %p120, %p121
      %p123 = scmp.ne.s32.totalorder %s115, %s117
      %p124 = scmp.eq.s32.totalorder %s34, 1
      %p125 = por %p123, %p124
      %p126 = scmp.ne.s32.totalorder %s117, %s118
      %p127 = scmp.eq.s32.totalorder %s34, 0
      %p128 = por %p126, %p127
      %p129 = scmp.ne.s32.totalorder %s117, %s118
      %p130 = scmp.eq.s32.totalorder %s35, 1
      %p131 = por %p129, %p130
      %p133 = scmp.ne.s32.totalorder %s118, %s132
      %p134 = scmp.eq.s32.totalorder %s35, 0
      %p135 = por %p133, %p134
      %s137 = sadd.s32 %s136, 1
      %p140 = scmp.eq.s32.totalorder %s29, 1
      %p141 = scmp.ne.s32.totalorder %s136, %s138
      %p142 = scmp.eq.s32.totalorder %s29, 0
      %p143 = por %p141, %p142
      %p144 = scmp.ne.s32.totalorder %s136, %s138
      %p145 = scmp.eq.s32.totalorder %s34, 1
      %p146 = por %p144, %p145
      %p147 = scmp.ne.s32.totalorder %s138, %s139
      %p148 = scmp.eq.s32.totalorder %s34, 0
      %p149 = por %p147, %p148
      %p150 = scmp.ne.s32.totalorder %s138, %s139
      %p151 = scmp.eq.s32.totalorder %s35, 1
      %p152 = por %p150, %p151
      %p154 = scmp.ne.s32.totalorder %s139, %s153
      %p155 = scmp.eq.s32.totalorder %s35, 0
      %p156 = por %p154, %p155
      %s158 = sadd.s32 %s157, 1
      %p161 = scmp.eq.s32.totalorder %s29, 1
      %p162 = scmp.ne.s32.totalorder %s157, %s159
      %p163 = scmp.eq.s32.totalorder %s29, 0
      %p164 = por %p162, %p163
      %p165 = scmp.ne.s32.totalorder %s157, %s159
      %p166 = scmp.eq.s32.totalorder %s34, 1
      %p167 = por %p165, %p166
      %p168 = scmp.ne.s32.totalorder %s159, %s160
      %p169 = scmp.eq.s32.totalorder %s34, 0
      %p170 = por %p168, %p169
      %p171 = scmp.ne.s32.totalorder %s159, %s160
      %p172 = scmp.eq.s32.totalorder %s35, 1
      %p173 = por %p171, %p172
      %p175 = scmp.ne.s32.totalorder %s160, %s174
      %p176 = scmp.eq.s32.totalorder %s35, 0
      %p177 = por %p175, %p176
      %s179 = sadd.s32 %s178, 1
      %p182 = scmp.eq.s32.totalorder %s29, 1
      %p183 = scmp.ne.s32.totalorder %s178, %s180
      %p184 = scmp.eq.s32.totalorder %s29, 0
      %p185 = por %p183, %p184
      %p186 = scmp.ne.s32.totalorder %s178, %s180
      %p187 = scmp.eq.s32.totalorder %s34, 1
      %p188 = por %p186, %p187
      %p189 = scmp.ne.s32.totalorder %s180, %s181
      %p190 = scmp.eq.s32.totalorder %s34, 0
      %p191 = por %p189, %p190
      %p192 = scmp.ne.s32.totalorder %s180, %s181
      %p193 = scmp.eq.s32.totalorder %s35, 1
      %p194 = por %p192, %p193
      %p196 = scmp.ne.s32.totalorder %s181, %s195
      %p197 = scmp.eq.s32.totalorder %s35, 0
      %p198 = por %p196, %p197
      %s200 = sadd.s32 %s199, 1
      %p203 = scmp.eq.s32.totalorder %s29, 1
      %p204 = scmp.ne.s32.totalorder %s199, %s201
      %p205 = scmp.eq.s32.totalorder %s29, 0
      %p206 = por %p204, %p205
      %p207 = scmp.ne.s32.totalorder %s199, %s201
      %p208 = scmp.eq.s32.totalorder %s34, 1
      %p209 = por %p207, %p208
      %p210 = scmp.ne.s32.totalorder %s201, %s202
      %p211 = scmp.eq.s32.totalorder %s34, 0
      %p212 = por %p210, %p211
      %p213 = scmp.ne.s32.totalorder %s201, %s202
      %p214 = scmp.eq.s32.totalorder %s35, 1
      %p215 = por %p213, %p214
      %p217 = scmp.ne.s32.totalorder %s202, %s216
      %p218 = scmp.eq.s32.totalorder %s35, 0
      %p219 = por %p217, %p218
      %s221 = sadd.s32 %s220, 1
      %p224 = scmp.eq.s32.totalorder %s29, 1
      %p225 = scmp.ne.s32.totalorder %s220, %s222
      %p226 = scmp.eq.s32.totalorder %s29, 0
      %p227 = por %p225, %p226
      %p228 = scmp.ne.s32.totalorder %s220, %s222
      %p229 = scmp.eq.s32.totalorder %s34, 1
      %p230 = por %p228, %p229
      %p231 = scmp.ne.s32.totalorder %s222, %s223
      %p232 = scmp.eq.s32.totalorder %s34, 0
      %p233 = por %p231, %p232
      %p234 = scmp.ne.s32.totalorder %s222, %s223
      %p235 = scmp.eq.s32.totalorder %s35, 1
      %p236 = por %p234, %p235
      %p238 = scmp.ne.s32.totalorder %s223, %s237
      %p239 = scmp.eq.s32.totalorder %s35, 0
      %p240 = por %p238, %p239
      %s241 = ssub.s32 %s29, %s36
      %p242 = scmp.eq.s32.totalorder %s241, 0
      %s244 = sadd.s32 %s243, 1
      %s245 = scalar_select %p242, %s243, %s244
      %p248 = pneg %p242
      %p249 = scmp.eq.s32.totalorder %s29, 1
      %p250 = por %p248, %p249
      %p251 = scmp.ne.s32.totalorder %s243, %s246
      %p252 = scmp.eq.s32.totalorder %s29, 0
      %p253 = por %p251, %p252
      %p254 = scmp.ne.s32.totalorder %s243, %s246
      %p255 = scmp.eq.s32.totalorder %s34, 1
      %p256 = por %p254, %p255
      %p257 = scmp.ne.s32.totalorder %s246, %s247
      %p258 = scmp.eq.s32.totalorder %s34, 0
      %p259 = por %p257, %p258
      %p260 = scmp.ne.s32.totalorder %s246, %s247
      %p261 = scmp.eq.s32.totalorder %s35, 1
      %p262 = por %p260, %p261
      %p264 = scmp.ne.s32.totalorder %s247, %s263
      %p265 = scmp.eq.s32.totalorder %s35, 0
      %p266 = por %p264, %p265
      %s267 = ssub.s32 %s29, %s36
      %p268 = scmp.eq.s32.totalorder %s267, 0
      %s270 = sadd.s32 %s269, 1
      %s271 = scalar_select %p268, %s269, %s270
      %p274 = pneg %p268
      %p275 = scmp.eq.s32.totalorder %s29, 1
      %p276 = por %p274, %p275
      %p277 = scmp.ne.s32.totalorder %s269, %s272
      %p278 = scmp.eq.s32.totalorder %s29, 0
      %p279 = por %p277, %p278
      %p280 = scmp.ne.s32.totalorder %s269, %s272
      %p281 = scmp.eq.s32.totalorder %s34, 1
      %p282 = por %p280, %p281
      %p283 = scmp.ne.s32.totalorder %s272, %s273
      %p284 = scmp.eq.s32.totalorder %s34, 0
      %p285 = por %p283, %p284
      %p286 = scmp.ne.s32.totalorder %s272, %s273
      %p287 = scmp.eq.s32.totalorder %s35, 1
      %p288 = por %p286, %p287
      %p290 = scmp.ne.s32.totalorder %s273, %s289
      %p291 = scmp.eq.s32.totalorder %s35, 0
      %p292 = por %p290, %p291
      %p293 = scmp.le.s32.totalorder 1, %s29
      %p294 = scmp.lt.s32.totalorder %s29, 3
      %p295 = pnand %p293, %p294
      %p296 = pneg %p295
      // Predicated region
      $region9: #{tpu_custom_call.1} parent=5 // pred_check
        _
      $region10: #{tpu_custom_call.1} parent=5 // pred_check_branch
        %298 = sbr.rel (%p295) target = $region12
      $region11: #{tpu_custom_call.1} parent=5 // pred_region
        %s299 = ssub.s32 %s29, 1
        // Predicated region
        $region13: #{tpu_custom_call.1} parent=11 // pred_check
          %p300 = pneg %p128
        $region14: #{tpu_custom_call.1} parent=11 // pred_check_branch
          %302 = sbr.rel (%p300) target = $region16
        $region15: #{tpu_custom_call.1} parent=11 // pred_region
          _
        $region16: #{tpu_custom_call.1} parent=11 // pred_fallthru
          _
        // Predicated region
        $region17: #{tpu_custom_call.1} parent=11 // pred_check
          %p303 = pneg %p149
        $region18: #{tpu_custom_call.1} parent=11 // pred_check_branch
          %305 = sbr.rel (%p303) target = $region20
        $region19: #{tpu_custom_call.1} parent=11 // pred_region
          _
        $region20: #{tpu_custom_call.1} parent=11 // pred_fallthru
          _
        // Predicated region
        $region21: #{tpu_custom_call.1} parent=11 // pred_check
          %p306 = pneg %p170
        $region22: #{tpu_custom_call.1} parent=11 // pred_check_branch
          %308 = sbr.rel (%p306) target = $region24
        $region23: #{tpu_custom_call.1} parent=11 // pred_region
          _
        $region24: #{tpu_custom_call.1} parent=11 // pred_fallthru
          _
        // Predicated region
        $region25: #{tpu_custom_call.1} parent=11 // pred_check
          %p309 = pneg %p191
        $region26: #{tpu_custom_call.1} parent=11 // pred_check_branch
          %311 = sbr.rel (%p309) target = $region28
        $region27: #{tpu_custom_call.1} parent=11 // pred_region
          _
        $region28: #{tpu_custom_call.1} parent=11 // pred_fallthru
          _
        // Predicated region
        $region29: #{tpu_custom_call.1} parent=11 // pred_check
          %p312 = pneg %p212
        $region30: #{tpu_custom_call.1} parent=11 // pred_check_branch
          %314 = sbr.rel (%p312) target = $region32
        $region31: #{tpu_custom_call.1} parent=11 // pred_region
          _
        $region32: #{tpu_custom_call.1} parent=11 // pred_fallthru
          _
        // Predicated region
        $region33: #{tpu_custom_call.1} parent=11 // pred_check
          %p315 = pneg %p233
        $region34: #{tpu_custom_call.1} parent=11 // pred_check_branch
          %317 = sbr.rel (%p315) target = $region36
        $region35: #{tpu_custom_call.1} parent=11 // pred_region
          _
        $region36: #{tpu_custom_call.1} parent=11 // pred_fallthru
          _
      $region12: #{tpu_custom_call.1} parent=5 // pred_fallthru
        _
      %p318 = scmp.lt.s32.totalorder %s29, 2
      // Predicated region
      $region37: #{tpu_custom_call.1} parent=5 // pred_check
        %p319 = pneg %p318
      $region38: #{tpu_custom_call.1} parent=5 // pred_check_branch
        %321 = sbr.rel (%p319) target = $region40
      $region39: #{tpu_custom_call.1} parent=5 // pred_region
        // Predicated region
        $region41: #{tpu_custom_call.1} parent=39 // pred_check
          %p322 = pneg %p49
        $region42: #{tpu_custom_call.1} parent=39 // pred_check_branch
          %324 = sbr.rel (%p322) target = $region44
        $region43: #{tpu_custom_call.1} parent=39 // pred_region
          %s325 = sand.u32 %s39, 1
          %s326 = scalar_lea.sflag [#allocation3], %s325
          %s327 = sand.u32 %s39, 1
          %s328 = smul.addr %s327, 16
          %s329 = scalar_lea.vmem [#allocation2], %s328
          %s330 = smul.u32 2, %s29
          %s332 = ssub.s32 256, 256
          %333 = vsyncadd %s326, %s332
          %s334 = smul.addr %s330, 2
          %s335 = smul.addr %s334, 64
          %s336 = scalar_lea.hbm %s0, %s335
          %s337 = sshll.u32 %s329, 4
          %s338 = int_to_ptr.vmem [resolvable:$true] %s337
          %343 = dma.hbm_to_vmem [thread:$0]  %s336, 256, %s338, %s326, 128, 128, 8
        $region44: #{tpu_custom_call.1} parent=39 // pred_fallthru
          _
        // Predicated region
        $region45: #{tpu_custom_call.1} parent=39 // pred_check
          %p344 = pneg %p75
        $region46: #{tpu_custom_call.1} parent=39 // pred_check_branch
          %346 = sbr.rel (%p344) target = $region48
        $region47: #{tpu_custom_call.1} parent=39 // pred_region
          %s347 = sand.u32 %s29, 1
          %s348 = scalar_lea.sflag [#allocation6], %s347
          %s349 = sand.u32 %s65, 1
          %s350 = smul.addr %s349, 16
          %s351 = scalar_lea.vmem [#allocation5], %s350
          %s352 = smul.u32 2, %s29
          %s354 = ssub.s32 256, 256
          %355 = vsyncadd %s348, %s354
          %s356 = smul.addr %s352, 2
          %s357 = smul.addr %s356, 64
          %s358 = scalar_lea.hbm %s1, %s357
          %s359 = sshll.u32 %s351, 4
          %s360 = int_to_ptr.vmem [resolvable:$true] %s359
          %365 = dma.hbm_to_vmem [thread:$0]  %s358, 256, %s360, %s348, 128, 128, 8
        $region48: #{tpu_custom_call.1} parent=39 // pred_fallthru
          _
        // Predicated region
        $region49: #{tpu_custom_call.1} parent=39 // pred_check
          %p366 = pneg %p101
        $region50: #{tpu_custom_call.1} parent=39 // pred_check_branch
          %368 = sbr.rel (%p366) target = $region52
        $region51: #{tpu_custom_call.1} parent=39 // pred_region
          %s369 = sand.u32 %s29, 1
          %s370 = scalar_lea.sflag [#allocation6], %s369
          %s371 = sand.u32 %s91, 1
          %s372 = smul.addr %s371, 16
          %s373 = scalar_lea.vmem [#allocation7], %s372
          %s374 = smul.u32 2, %s29
          %s376 = ssub.s32 256, 256
          %377 = vsyncadd %s370, %s376
          %s378 = smul.addr %s374, 2
          %s379 = smul.addr %s378, 64
          %s380 = scalar_lea.hbm %s2, %s379
          %s381 = sshll.u32 %s373, 4
          %s382 = int_to_ptr.vmem [resolvable:$true] %s381
          %387 = dma.hbm_to_vmem [thread:$0]  %s380, 256, %s382, %s370, 128, 128, 8
        $region52: #{tpu_custom_call.1} parent=39 // pred_fallthru
          _
      $region40: #{tpu_custom_call.1} parent=5 // pred_fallthru
        _
      %p388 = scmp.le.s32.totalorder 1, %s29
      %p389 = scmp.lt.s32.totalorder %s29, 3
      %p390 = pnand %p388, %p389
      %p391 = pneg %p390
      // Predicated region
      $region53: #{tpu_custom_call.1} parent=5 // pred_check
        _
      $region54: #{tpu_custom_call.1} parent=5 // pred_check_branch
        %393 = sbr.rel (%p390) target = $region56
      $region55: #{tpu_custom_call.1} parent=5 // pred_region
        %s394 = ssub.s32 %s29, 1
        %s395 = sand.u32 %s42, 1
        %s396 = scalar_lea.sflag [#allocation3], %s395
        %s397 = sand.u32 %s42, 1
        %s398 = smul.addr %s397, 16
        %s399 = scalar_lea.vmem [#allocation2], %s398
        // Predicated region
        $region57: #{tpu_custom_call.1} parent=55 // pred_check
          %p400 = pneg %p55
        $region58: #{tpu_custom_call.1} parent=55 // pred_check_branch
          %402 = sbr.rel (%p400) target = $region60
        $region59: #{tpu_custom_call.1} parent=55 // pred_region
          %403 = dma.done %s396, 256
        $region60: #{tpu_custom_call.1} parent=55 // pred_fallthru
          _
        %s404 = sand.u32 %s34, 1
        %s405 = scalar_lea.sflag [#allocation6], %s404
        %s406 = sand.u32 %s68, 1
        %s407 = smul.addr %s406, 16
        %s408 = scalar_lea.vmem [#allocation5], %s407
        // Predicated region
        $region61: #{tpu_custom_call.1} parent=55 // pred_check
          %p409 = pneg %p81
        $region62: #{tpu_custom_call.1} parent=55 // pred_check_branch
          %411 = sbr.rel (%p409) target = $region64
        $region63: #{tpu_custom_call.1} parent=55 // pred_region
          %412 = dma.done %s405, 256
        $region64: #{tpu_custom_call.1} parent=55 // pred_fallthru
          _
        %s413 = sand.u32 %s34, 1
        %s414 = scalar_lea.sflag [#allocation6], %s413
        %s415 = sand.u32 %s94, 1
        %s416 = smul.addr %s415, 16
        %s417 = scalar_lea.vmem [#allocation7], %s416
        // Predicated region
        $region65: #{tpu_custom_call.1} parent=55 // pred_check
          %p418 = pneg %p107
        $region66: #{tpu_custom_call.1} parent=55 // pred_check_branch
          %420 = sbr.rel (%p418) target = $region68
        $region67: #{tpu_custom_call.1} parent=55 // pred_region
          %421 = dma.done %s414, 256
        $region68: #{tpu_custom_call.1} parent=55 // pred_fallthru
          _
        %s422 = sand.u32 %s42, 1
        %s423 = scalar_lea.sflag [#allocation3], %s422
        %s424 = sand.u32 %s42, 1
        %s425 = smul.addr %s424, 16
        %s426 = scalar_lea.vmem [#allocation2], %s425
        %p427 = pneg %p55
        %p428 = pneg %p52
        %s429 = sand.u32 %s34, 1
        %s430 = scalar_lea.sflag [#allocation6], %s429
        %s431 = sand.u32 %s68, 1
        %s432 = smul.addr %s431, 16
        %s433 = scalar_lea.vmem [#allocation5], %s432
        %p434 = pneg %p81
        %p435 = pneg %p78
        %s436 = sand.u32 %s34, 1
        %s437 = scalar_lea.sflag [#allocation6], %s436
        %s438 = sand.u32 %s94, 1
        %s439 = smul.addr %s438, 16
        %s440 = scalar_lea.vmem [#allocation7], %s439
        %p441 = pneg %p107
        %p442 = pneg %p104
        %p443 = pneg %p128
        %p444 = pneg %p125
        %p445 = pneg %p149
        %p446 = pneg %p146
        %p447 = pneg %p170
        %p448 = pneg %p167
        %p449 = pneg %p191
        %p450 = pneg %p188
        %p451 = pneg %p212
        %p452 = pneg %p209
        %p453 = pneg %p233
        %p454 = pneg %p230
        %p455 = pneg %p259
        %p456 = pneg %p256
        %s457 = sand.u32 %s246, 1
        %s458 = scalar_lea.sflag [#allocation4], %s457
        %s459 = sand.u32 %s246, 1
        %s460 = smul.addr %s459, 16
        %s461 = scalar_lea.vmem [#allocation8], %s460
        %p462 = pneg %p285
        %p463 = pneg %p282
        %s464 = sand.u32 %s272, 1
        %s465 = scalar_lea.sflag [#allocation10], %s464
        %s466 = sand.u32 %s272, 1
        %s467 = smul.addr %s466, 4
        %s468 = scalar_lea.vmem [#allocation9], %s467
        %s469 = smul.u32 2, %s34
        %s470 = smul.u32 2, %s34
        %s471 = smul.u32 2, %s34
        %s472 = smul.u32 2, %s34
        %v473 = vld [vmem:[%s3] sm:$0xf]
        %v474 = vld [vmem:[%s4] sm:$0xf]
        %v475 = vld [vmem:[%s5] sm:$0xf]
        %v476 = vld [vmem:[%s6] sm:$0xf]
        %v477 = vld [vmem:[%s7] sm:$0xf]
        %v478 = vld [vmem:[%s8] sm:$0xf]
        %v479 = vld [vmem:[%s399] sm:$0xff]
        %481 = vset.pattern.permute.xlu0 0
        %482 = vperm.xlu0 %481, %v476
        %v483 = vpop.permute.xlu0 %482
        %v486 = vcombine.high %v479, %v479
        %vm487 = vcmask 31744
        %v489 = vsel %vm487, %v473, 0
        %vm491 = vcmask 1043456
        %v492 = vsel %vm491, %v479, 0
        %v494 = vsel %vm491, %v486, 0
        %496 = vmatprep.subr.mxu0 %v494
        %497 = vmatpush1.msra.mxu0 %v492
        %498 = vmatprep.subr.mxu0 0.0
        %499 = vmatpush1.msra.mxu0 0.0
        %500 = vmatprep.subr.mxu0 0.0
        %501 = vmatpush1.msra.mxu0 0.0
        %502 = vmatprep.subr.mxu0 0.0
        %503 = vmatpush1.msra.mxu0 0.0
        %504 = vmatprep.subr.mxu0 0.0
        %505 = vmatpush1.msra.mxu0 0.0
        %506 = vmatprep.subr.mxu0 0.0
        %507 = vmatpush1.msra.mxu0 0.0
        %508 = vmatprep.subr.mxu0 0.0
        %509 = vmatpush1.msra.mxu0 0.0
        %510 = vmatprep.subr.mxu0 0.0
        %511 = vmatpush1.msra.mxu0 0.0
        %512 = vmatprep.subr.mxu0 0.0
        %513 = vmatpush1.msra.mxu0 0.0
        %514 = vmatprep.subr.mxu0 0.0
        %515 = vmatpush1.msra.mxu0 0.0
        %516 = vmatprep.subr.mxu0 0.0
        %517 = vmatpush1.msra.mxu0 0.0
        %518 = vmatprep.subr.mxu0 0.0
        %519 = vmatpush1.msra.mxu0 0.0
        %520 = vmatprep.subr.mxu0 0.0
        %521 = vmatpush1.msra.mxu0 0.0
        %522 = vmatprep.subr.mxu0 0.0
        %523 = vmatpush1.msra.mxu0 0.0
        %524 = vmatprep.subr.mxu0 0.0
        %525 = vmatpush1.msra.mxu0 0.0
        %526 = vmatprep.subr.mxu0 0.0
        %527 = vmatpush1.msra.mxu0 0.0
        %528 = vmatprep.subr.mxu0 0.0
        %529 = vmatpush1.msra.mxu0 0.0
        %530 = vmatprep.subr.mxu0 0.0
        %531 = vmatpush1.msra.mxu0 0.0
        %532 = vmatprep.subr.mxu0 0.0
        %533 = vmatpush1.msra.mxu0 0.0
        %534 = vmatprep.subr.mxu0 0.0
        %535 = vmatpush1.msra.mxu0 0.0
        %536 = vmatprep.subr.mxu0 0.0
        %537 = vmatpush1.msra.mxu0 0.0
        %538 = vmatprep.subr.mxu0 0.0
        %539 = vmatpush1.msra.mxu0 0.0
        %540 = vmatprep.subr.mxu0 0.0
        %541 = vmatpush1.msra.mxu0 0.0
        %542 = vmatprep.subr.mxu0 0.0
        %543 = vmatpush1.msra.mxu0 0.0
        %544 = vmatprep.subr.mxu0 0.0
        %545 = vmatpush1.msra.mxu0 0.0
        %546 = vmatprep.subr.mxu0 0.0
        %547 = vmatpush1.msra.mxu0 0.0
        %548 = vmatprep.subr.mxu0 0.0
        %549 = vmatpush1.msra.mxu0 0.0
        %550 = vmatprep.subr.mxu0 0.0
        %551 = vmatpush1.msra.mxu0 0.0
        %552 = vmatprep.subr.mxu0 0.0
        %553 = vmatpush1.msra.mxu0 0.0
        %554 = vmatprep.subr.mxu0 0.0
        %555 = vmatpush1.msra.mxu0 0.0
        %556 = vmatprep.subr.mxu0 0.0
        %557 = vmatpush1.msra.mxu0 0.0
        %558 = vmatprep.subr.mxu0 0.0
        %559 = vmatpush1.msra.mxu0 0.0
        %560 = vmatprep.mubr.f32.mxu0 0.0
        %561 = vmatmul.mubr.f32.gmra.mrb[0].mxu0 %v489
        %v562 = vpop.f32.mrb[0].mxu0
        %v563 = vadd.f32 %v483, %v562
        %v564 = vpop.f32.mrb[0].mxu0
        %v565 = vadd.f32 %v483, %v564
        %566 = vdwg.mxu0
        %v567 = vld [vmem:[%s408] sm:$0xff]
        %569 = vset.pattern.permute.xlu0 0
        %570 = vperm.xlu0 %569, %v477
        %v571 = vpop.permute.xlu0 %570
        %v574 = vcombine.high %v567, %v567
        %v576 = vsel %vm487, %v474, 0
        %v578 = vsel %vm491, %v567, 0
        %v580 = vsel %vm491, %v574, 0
        %582 = vmatprep.subr.mxu0 %v580
        %583 = vmatpush1.msra.mxu0 %v578
        %584 = vmatprep.subr.mxu0 0.0
        %585 = vmatpush1.msra.mxu0 0.0
        %586 = vmatprep.subr.mxu0 0.0
        %587 = vmatpush1.msra.mxu0 0.0
        %588 = vmatprep.subr.mxu0 0.0
        %589 = vmatpush1.msra.mxu0 0.0
        %590 = vmatprep.subr.mxu0 0.0
        %591 = vmatpush1.msra.mxu0 0.0
        %592 = vmatprep.subr.mxu0 0.0
        %593 = vmatpush1.msra.mxu0 0.0
        %594 = vmatprep.subr.mxu0 0.0
        %595 = vmatpush1.msra.mxu0 0.0
        %596 = vmatprep.subr.mxu0 0.0
        %597 = vmatpush1.msra.mxu0 0.0
        %598 = vmatprep.subr.mxu0 0.0
        %599 = vmatpush1.msra.mxu0 0.0
        %600 = vmatprep.subr.mxu0 0.0
        %601 = vmatpush1.msra.mxu0 0.0
        %602 = vmatprep.subr.mxu0 0.0
        %603 = vmatpush1.msra.mxu0 0.0
        %604 = vmatprep.subr.mxu0 0.0
        %605 = vmatpush1.msra.mxu0 0.0
        %606 = vmatprep.subr.mxu0 0.0
        %607 = vmatpush1.msra.mxu0 0.0
        %608 = vmatprep.subr.mxu0 0.0
        %609 = vmatpush1.msra.mxu0 0.0
        %610 = vmatprep.subr.mxu0 0.0
        %611 = vmatpush1.msra.mxu0 0.0
        %612 = vmatprep.subr.mxu0 0.0
        %613 = vmatpush1.msra.mxu0 0.0
        %614 = vmatprep.subr.mxu0 0.0
        %615 = vmatpush1.msra.mxu0 0.0
        %616 = vmatprep.subr.mxu0 0.0
        %617 = vmatpush1.msra.mxu0 0.0
        %618 = vmatprep.subr.mxu0 0.0
        %619 = vmatpush1.msra.mxu0 0.0
        %620 = vmatprep.subr.mxu0 0.0
        %621 = vmatpush1.msra.mxu0 0.0
        %622 = vmatprep.subr.mxu0 0.0
        %623 = vmatpush1.msra.mxu0 0.0
        %624 = vmatprep.subr.mxu0 0.0
        %625 = vmatpush1.msra.mxu0 0.0
        %626 = vmatprep.subr.mxu0 0.0
        %627 = vmatpush1.msra.mxu0 0.0
        %628 = vmatprep.subr.mxu0 0.0
        %629 = vmatpush1.msra.mxu0 0.0
        %630 = vmatprep.subr.mxu0 0.0
        %631 = vmatpush1.msra.mxu0 0.0
        %632 = vmatprep.subr.mxu0 0.0
        %633 = vmatpush1.msra.mxu0 0.0
        %634 = vmatprep.subr.mxu0 0.0
        %635 = vmatpush1.msra.mxu0 0.0
        %636 = vmatprep.subr.mxu0 0.0
        %637 = vmatpush1.msra.mxu0 0.0
        %638 = vmatprep.subr.mxu0 0.0
        %639 = vmatpush1.msra.mxu0 0.0
        %640 = vmatprep.subr.mxu0 0.0
        %641 = vmatpush1.msra.mxu0 0.0
        %642 = vmatprep.subr.mxu0 0.0
        %643 = vmatpush1.msra.mxu0 0.0
        %644 = vmatprep.subr.mxu0 0.0
        %645 = vmatpush1.msra.mxu0 0.0
        %646 = vmatprep.mubr.f32.mxu0 0.0
        %647 = vmatmul.mubr.f32.gmra.mrb[0].mxu0 %v576
        %v648 = vpop.f32.mrb[0].mxu0
        %v649 = vadd.f32 %v571, %v648
        %v650 = vpop.f32.mrb[0].mxu0
        %v651 = vadd.f32 %v571, %v650
        %652 = vdwg.mxu0
        %v653 = vld [vmem:[%s417] sm:$0xff]
        %655 = vset.pattern.permute.xlu0 0
        %656 = vperm.xlu0 %655, %v478
        %v657 = vpop.permute.xlu0 %656
        %v660 = vcombine.high %v653, %v653
        %v662 = vsel %vm487, %v475, 0
        %v664 = vsel %vm491, %v653, 0
        %v666 = vsel %vm491, %v660, 0
        %668 = vmatprep.subr.mxu0 %v666
        %669 = vmatpush1.msra.mxu0 %v664
        %670 = vmatprep.subr.mxu0 0.0
        %671 = vmatpush1.msra.mxu0 0.0
        %672 = vmatprep.subr.mxu0 0.0
        %673 = vmatpush1.msra.mxu0 0.0
        %674 = vmatprep.subr.mxu0 0.0
        %675 = vmatpush1.msra.mxu0 0.0
        %676 = vmatprep.subr.mxu0 0.0
        %677 = vmatpush1.msra.mxu0 0.0
        %678 = vmatprep.subr.mxu0 0.0
        %679 = vmatpush1.msra.mxu0 0.0
        %680 = vmatprep.subr.mxu0 0.0
        %681 = vmatpush1.msra.mxu0 0.0
        %682 = vmatprep.subr.mxu0 0.0
        %683 = vmatpush1.msra.mxu0 0.0
        %684 = vmatprep.subr.mxu0 0.0
        %685 = vmatpush1.msra.mxu0 0.0
        %686 = vmatprep.subr.mxu0 0.0
        %687 = vmatpush1.msra.mxu0 0.0
        %688 = vmatprep.subr.mxu0 0.0
        %689 = vmatpush1.msra.mxu0 0.0
        %690 = vmatprep.subr.mxu0 0.0
        %691 = vmatpush1.msra.mxu0 0.0
        %692 = vmatprep.subr.mxu0 0.0
        %693 = vmatpush1.msra.mxu0 0.0
        %694 = vmatprep.subr.mxu0 0.0
        %695 = vmatpush1.msra.mxu0 0.0
        %696 = vmatprep.subr.mxu0 0.0
        %697 = vmatpush1.msra.mxu0 0.0
        %698 = vmatprep.subr.mxu0 0.0
        %699 = vmatpush1.msra.mxu0 0.0
        %700 = vmatprep.subr.mxu0 0.0
        %701 = vmatpush1.msra.mxu0 0.0
        %702 = vmatprep.subr.mxu0 0.0
        %703 = vmatpush1.msra.mxu0 0.0
        %704 = vmatprep.subr.mxu0 0.0
        %705 = vmatpush1.msra.mxu0 0.0
        %706 = vmatprep.subr.mxu0 0.0
        %707 = vmatpush1.msra.mxu0 0.0
        %708 = vmatprep.subr.mxu0 0.0
        %709 = vmatpush1.msra.mxu0 0.0
        %710 = vmatprep.subr.mxu0 0.0
        %711 = vmatpush1.msra.mxu0 0.0
        %712 = vmatprep.subr.mxu0 0.0
        %713 = vmatpush1.msra.mxu0 0.0
        %714 = vmatprep.subr.mxu0 0.0
        %715 = vmatpush1.msra.mxu0 0.0
        %716 = vmatprep.subr.mxu0 0.0
        %717 = vmatpush1.msra.mxu0 0.0
        %718 = vmatprep.subr.mxu0 0.0
        %719 = vmatpush1.msra.mxu0 0.0
        %720 = vmatprep.subr.mxu0 0.0
        %721 = vmatpush1.msra.mxu0 0.0
        %722 = vmatprep.subr.mxu0 0.0
        %723 = vmatpush1.msra.mxu0 0.0
        %724 = vmatprep.subr.mxu0 0.0
        %725 = vmatpush1.msra.mxu0 0.0
        %726 = vmatprep.subr.mxu0 0.0
        %727 = vmatpush1.msra.mxu0 0.0
        %728 = vmatprep.subr.mxu0 0.0
        %729 = vmatpush1.msra.mxu0 0.0
        %730 = vmatprep.subr.mxu0 0.0
        %731 = vmatpush1.msra.mxu0 0.0
        %732 = vmatprep.mubr.f32.mxu0 0.0
        %733 = vmatmul.mubr.f32.gmra.mrb[0].mxu0 %v662
        %v734 = vpop.f32.mrb[0].mxu0
        %v735 = vadd.f32 %v657, %v734
        %v736 = vpop.f32.mrb[0].mxu0
        %v737 = vadd.f32 %v657, %v736
        %738 = vdwg.mxu0
        %739 = vmatprep.subr.mxu0 %v651
        %740 = vmatpush1.xpose.msra.mxu0 %v649
        %741 = vmatprep.subr.mxu0 0.0
        %742 = vmatpush1.xpose.msra.mxu0 0.0
        %743 = vmatprep.subr.mxu0 0.0
        %744 = vmatpush1.xpose.msra.mxu0 0.0
        %745 = vmatprep.subr.mxu0 0.0
        %746 = vmatpush1.xpose.msra.mxu0 0.0
        %747 = vmatprep.subr.mxu0 0.0
        %748 = vmatpush1.xpose.msra.mxu0 0.0
        %749 = vmatprep.subr.mxu0 0.0
        %750 = vmatpush1.xpose.msra.mxu0 0.0
        %751 = vmatprep.subr.mxu0 0.0
        %752 = vmatpush1.xpose.msra.mxu0 0.0
        %753 = vmatprep.subr.mxu0 0.0
        %754 = vmatpush1.xpose.msra.mxu0 0.0
        %755 = vmatprep.subr.mxu0 0.0
        %756 = vmatpush1.xpose.msra.mxu0 0.0
        %757 = vmatprep.subr.mxu0 0.0
        %758 = vmatpush1.xpose.msra.mxu0 0.0
        %759 = vmatprep.subr.mxu0 0.0
        %760 = vmatpush1.xpose.msra.mxu0 0.0
        %761 = vmatprep.subr.mxu0 0.0
        %762 = vmatpush1.xpose.msra.mxu0 0.0
        %763 = vmatprep.subr.mxu0 0.0
        %764 = vmatpush1.xpose.msra.mxu0 0.0
        %765 = vmatprep.subr.mxu0 0.0
        %766 = vmatpush1.xpose.msra.mxu0 0.0
        %767 = vmatprep.subr.mxu0 0.0
        %768 = vmatpush1.xpose.msra.mxu0 0.0
        %769 = vmatprep.subr.mxu0 0.0
        %770 = vmatpush1.xpose.msra.mxu0 0.0
        %771 = vmatprep.subr.mxu0 0.0
        %772 = vmatpush1.xpose.msra.mxu0 0.0
        %773 = vmatprep.subr.mxu0 0.0
        %774 = vmatpush1.xpose.msra.mxu0 0.0
        %775 = vmatprep.subr.mxu0 0.0
        %776 = vmatpush1.xpose.msra.mxu0 0.0
        %777 = vmatprep.subr.mxu0 0.0
        %778 = vmatpush1.xpose.msra.mxu0 0.0
        %779 = vmatprep.subr.mxu0 0.0
        %780 = vmatpush1.xpose.msra.mxu0 0.0
        %781 = vmatprep.subr.mxu0 0.0
        %782 = vmatpush1.xpose.msra.mxu0 0.0
        %783 = vmatprep.subr.mxu0 0.0
        %784 = vmatpush1.xpose.msra.mxu0 0.0
        %785 = vmatprep.subr.mxu0 0.0
        %786 = vmatpush1.xpose.msra.mxu0 0.0
        %787 = vmatprep.subr.mxu0 0.0
        %788 = vmatpush1.xpose.msra.mxu0 0.0
        %789 = vmatprep.subr.mxu0 0.0
        %790 = vmatpush1.xpose.msra.mxu0 0.0
        %791 = vmatprep.subr.mxu0 0.0
        %792 = vmatpush1.xpose.msra.mxu0 0.0
        %793 = vmatprep.subr.mxu0 0.0
        %794 = vmatpush1.xpose.msra.mxu0 0.0
        %795 = vmatprep.subr.mxu0 0.0
        %796 = vmatpush1.xpose.msra.mxu0 0.0
        %797 = vmatprep.subr.mxu0 0.0
        %798 = vmatpush1.xpose.msra.mxu0 0.0
        %799 = vmatprep.subr.mxu0 0.0
        %800 = vmatpush1.xpose.msra.mxu0 0.0
        %801 = vmatprep.subr.mxu0 0.0
        %802 = vmatpush1.xpose.msra.mxu0 0.0
        %803 = vmatprep.mubr.f32.mxu0 %v565
        %804 = vmatmul.mubr.f32.gmra.mrb[0].mxu0 %v563
        %v805 = vpop.f32.mrb[0].mxu0
        %v806 = vadd.f32 0.0, %v805
        %v807 = vpop.f32.mrb[0].mxu0
        %808 = vdwg.mxu0
        %v809 = vmul.f32 %v806, 0.0625
        %vm810 = vcmask 27648
        %v811 = vsel %vm810, %v809, -inf
        %812 = vmax.xlane.f32.xlu0 %v811
        %v813 = vpop.xlane.xlu0 %812
        %v814 = vsub.f32 %v809, %v813
        %v815 = vmul.f32 %v814, 1.442695
        %v816 = vpow.pop %v815
        %v817 = vsel %vm810, %v816, 0.0
        %818 = vadd.xlane.f32.xlu0 %v817
        %v819 = vpop.xlane.xlu0 %818
        %v820 = vrcp.pop %v819
        %v821 = vmul.f32 %v816, %v820
        %v823 = vsel %vm487, %v821, 0
        %v826 = vsel %vm491, %v735, 0
        %v829 = vsel %vm491, %v737, 0
        %831 = vmatprep.subr.mxu0 %v829
        %832 = vmatpush1.msra.mxu0 %v826
        %833 = vmatprep.subr.mxu0 0.0
        %834 = vmatpush1.msra.mxu0 0.0
        %835 = vmatprep.subr.mxu0 0.0
        %836 = vmatpush1.msra.mxu0 0.0
        %837 = vmatprep.subr.mxu0 0.0
        %838 = vmatpush1.msra.mxu0 0.0
        %839 = vmatprep.subr.mxu0 0.0
        %840 = vmatpush1.msra.mxu0 0.0
        %841 = vmatprep.subr.mxu0 0.0
        %842 = vmatpush1.msra.mxu0 0.0
        %843 = vmatprep.subr.mxu0 0.0
        %844 = vmatpush1.msra.mxu0 0.0
        %845 = vmatprep.subr.mxu0 0.0
        %846 = vmatpush1.msra.mxu0 0.0
        %847 = vmatprep.subr.mxu0 0.0
        %848 = vmatpush1.msra.mxu0 0.0
        %849 = vmatprep.subr.mxu0 0.0
        %850 = vmatpush1.msra.mxu0 0.0
        %851 = vmatprep.subr.mxu0 0.0
        %852 = vmatpush1.msra.mxu0 0.0
        %853 = vmatprep.subr.mxu0 0.0
        %854 = vmatpush1.msra.mxu0 0.0
        %855 = vmatprep.subr.mxu0 0.0
        %856 = vmatpush1.msra.mxu0 0.0
        %857 = vmatprep.subr.mxu0 0.0
        %858 = vmatpush1.msra.mxu0 0.0
        %859 = vmatprep.subr.mxu0 0.0
        %860 = vmatpush1.msra.mxu0 0.0
        %861 = vmatprep.subr.mxu0 0.0
        %862 = vmatpush1.msra.mxu0 0.0
        %863 = vmatprep.subr.mxu0 0.0
        %864 = vmatpush1.msra.mxu0 0.0
        %865 = vmatprep.subr.mxu0 0.0
        %866 = vmatpush1.msra.mxu0 0.0
        %867 = vmatprep.subr.mxu0 0.0
        %868 = vmatpush1.msra.mxu0 0.0
        %869 = vmatprep.subr.mxu0 0.0
        %870 = vmatpush1.msra.mxu0 0.0
        %871 = vmatprep.subr.mxu0 0.0
        %872 = vmatpush1.msra.mxu0 0.0
        %873 = vmatprep.subr.mxu0 0.0
        %874 = vmatpush1.msra.mxu0 0.0
        %875 = vmatprep.subr.mxu0 0.0
        %876 = vmatpush1.msra.mxu0 0.0
        %877 = vmatprep.subr.mxu0 0.0
        %878 = vmatpush1.msra.mxu0 0.0
        %879 = vmatprep.subr.mxu0 0.0
        %880 = vmatpush1.msra.mxu0 0.0
        %881 = vmatprep.subr.mxu0 0.0
        %882 = vmatpush1.msra.mxu0 0.0
        %883 = vmatprep.subr.mxu0 0.0
        %884 = vmatpush1.msra.mxu0 0.0
        %885 = vmatprep.subr.mxu0 0.0
        %886 = vmatpush1.msra.mxu0 0.0
        %887 = vmatprep.subr.mxu0 0.0
        %888 = vmatpush1.msra.mxu0 0.0
        %889 = vmatprep.subr.mxu0 0.0
        %890 = vmatpush1.msra.mxu0 0.0
        %891 = vmatprep.subr.mxu0 0.0
        %892 = vmatpush1.msra.mxu0 0.0
        %893 = vmatprep.subr.mxu0 0.0
        %894 = vmatpush1.msra.mxu0 0.0
        %895 = vmatprep.mubr.f32.mxu0 0.0
        %896 = vmatmul.mubr.f32.gmra.mrb[0].mxu0 %v823
        %v897 = vpop.f32.mrb[0].mxu0
        %v898 = vadd.f32 0.0, %v897
        %v899 = vpop.f32.mrb[0].mxu0
        %v900 = vadd.f32 0.0, %v899
        %901 = vdwg.mxu0
        %v904 = vcombine.low %v898, %v900
        %906 = vst [vmem:[%s461] sm:$0xff] %v904
        %907 = vst.msk [vmem:[%s468] sm:$0xf] %vm810, %v821
        %s908 = scalar_lea.vmem %s399, 8 [#allocation2]
        %v909 = vld [vmem:[%s908] sm:$0xff]
        %v911 = vcombine.high %v909, %v909
        %v912 = vsel %vm491, %v909, 0
        %v914 = vsel %vm491, %v911, 0
        %916 = vmatprep.subr.mxu0 %v914
        %917 = vmatpush1.msra.mxu0 %v912
        %918 = vmatprep.subr.mxu0 0.0
        %919 = vmatpush1.msra.mxu0 0.0
        %920 = vmatprep.subr.mxu0 0.0
        %921 = vmatpush1.msra.mxu0 0.0
        %922 = vmatprep.subr.mxu0 0.0
        %923 = vmatpush1.msra.mxu0 0.0
        %924 = vmatprep.subr.mxu0 0.0
        %925 = vmatpush1.msra.mxu0 0.0
        %926 = vmatprep.subr.mxu0 0.0
        %927 = vmatpush1.msra.mxu0 0.0
        %928 = vmatprep.subr.mxu0 0.0
        %929 = vmatpush1.msra.mxu0 0.0
        %930 = vmatprep.subr.mxu0 0.0
        %931 = vmatpush1.msra.mxu0 0.0
        %932 = vmatprep.subr.mxu0 0.0
        %933 = vmatpush1.msra.mxu0 0.0
        %934 = vmatprep.subr.mxu0 0.0
        %935 = vmatpush1.msra.mxu0 0.0
        %936 = vmatprep.subr.mxu0 0.0
        %937 = vmatpush1.msra.mxu0 0.0
        %938 = vmatprep.subr.mxu0 0.0
        %939 = vmatpush1.msra.mxu0 0.0
        %940 = vmatprep.subr.mxu0 0.0
        %941 = vmatpush1.msra.mxu0 0.0
        %942 = vmatprep.subr.mxu0 0.0
        %943 = vmatpush1.msra.mxu0 0.0
        %944 = vmatprep.subr.mxu0 0.0
        %945 = vmatpush1.msra.mxu0 0.0
        %946 = vmatprep.subr.mxu0 0.0
        %947 = vmatpush1.msra.mxu0 0.0
        %948 = vmatprep.subr.mxu0 0.0
        %949 = vmatpush1.msra.mxu0 0.0
        %950 = vmatprep.subr.mxu0 0.0
        %951 = vmatpush1.msra.mxu0 0.0
        %952 = vmatprep.subr.mxu0 0.0
        %953 = vmatpush1.msra.mxu0 0.0
        %954 = vmatprep.subr.mxu0 0.0
        %955 = vmatpush1.msra.mxu0 0.0
        %956 = vmatprep.subr.mxu0 0.0
        %957 = vmatpush1.msra.mxu0 0.0
        %958 = vmatprep.subr.mxu0 0.0
        %959 = vmatpush1.msra.mxu0 0.0
        %960 = vmatprep.subr.mxu0 0.0
        %961 = vmatpush1.msra.mxu0 0.0
        %962 = vmatprep.subr.mxu0 0.0
        %963 = vmatpush1.msra.mxu0 0.0
        %964 = vmatprep.subr.mxu0 0.0
        %965 = vmatpush1.msra.mxu0 0.0
        %966 = vmatprep.subr.mxu0 0.0
        %967 = vmatpush1.msra.mxu0 0.0
        %968 = vmatprep.subr.mxu0 0.0
        %969 = vmatpush1.msra.mxu0 0.0
        %970 = vmatprep.subr.mxu0 0.0
        %971 = vmatpush1.msra.mxu0 0.0
        %972 = vmatprep.subr.mxu0 0.0
        %973 = vmatpush1.msra.mxu0 0.0
        %974 = vmatprep.subr.mxu0 0.0
        %975 = vmatpush1.msra.mxu0 0.0
        %976 = vmatprep.subr.mxu0 0.0
        %977 = vmatpush1.msra.mxu0 0.0
        %978 = vmatprep.subr.mxu0 0.0
        %979 = vmatpush1.msra.mxu0 0.0
        %980 = vmatprep.mubr.f32.mxu0 0.0
        %981 = vmatmul.mubr.f32.gmra.mrb[0].mxu0 %v489
        %v982 = vpop.f32.mrb[0].mxu0
        %v983 = vadd.f32 %v483, %v982
        %v984 = vpop.f32.mrb[0].mxu0
        %v985 = vadd.f32 %v483, %v984
        %986 = vdwg.mxu0
        %s987 = scalar_lea.vmem %s408, 8 [#allocation5]
        %v988 = vld [vmem:[%s987] sm:$0xff]
        %v990 = vcombine.high %v988, %v988
        %v991 = vsel %vm491, %v988, 0
        %v993 = vsel %vm491, %v990, 0
        %995 = vmatprep.subr.mxu0 %v993
        %996 = vmatpush1.msra.mxu0 %v991
        %997 = vmatprep.subr.mxu0 0.0
        %998 = vmatpush1.msra.mxu0 0.0
        %999 = vmatprep.subr.mxu0 0.0
        %1000 = vmatpush1.msra.mxu0 0.0
        %1001 = vmatprep.subr.mxu0 0.0
        %1002 = vmatpush1.msra.mxu0 0.0
        %1003 = vmatprep.subr.mxu0 0.0
        %1004 = vmatpush1.msra.mxu0 0.0
        %1005 = vmatprep.subr.mxu0 0.0
        %1006 = vmatpush1.msra.mxu0 0.0
        %1007 = vmatprep.subr.mxu0 0.0
        %1008 = vmatpush1.msra.mxu0 0.0
        %1009 = vmatprep.subr.mxu0 0.0
        %1010 = vmatpush1.msra.mxu0 0.0
        %1011 = vmatprep.subr.mxu0 0.0
        %1012 = vmatpush1.msra.mxu0 0.0
        %1013 = vmatprep.subr.mxu0 0.0
        %1014 = vmatpush1.msra.mxu0 0.0
        %1015 = vmatprep.subr.mxu0 0.0
        %1016 = vmatpush1.msra.mxu0 0.0
        %1017 = vmatprep.subr.mxu0 0.0
        %1018 = vmatpush1.msra.mxu0 0.0
        %1019 = vmatprep.subr.mxu0 0.0
        %1020 = vmatpush1.msra.mxu0 0.0
        %1021 = vmatprep.subr.mxu0 0.0
        %1022 = vmatpush1.msra.mxu0 0.0
        %1023 = vmatprep.subr.mxu0 0.0
        %1024 = vmatpush1.msra.mxu0 0.0
        %1025 = vmatprep.subr.mxu0 0.0
        %1026 = vmatpush1.msra.mxu0 0.0
        %1027 = vmatprep.subr.mxu0 0.0
        %1028 = vmatpush1.msra.mxu0 0.0
        %1029 = vmatprep.subr.mxu0 0.0
        %1030 = vmatpush1.msra.mxu0 0.0
        %1031 = vmatprep.subr.mxu0 0.0
        %1032 = vmatpush1.msra.mxu0 0.0
        %1033 = vmatprep.subr.mxu0 0.0
        %1034 = vmatpush1.msra.mxu0 0.0
        %1035 = vmatprep.subr.mxu0 0.0
        %1036 = vmatpush1.msra.mxu0 0.0
        %1037 = vmatprep.subr.mxu0 0.0
        %1038 = vmatpush1.msra.mxu0 0.0
        %1039 = vmatprep.subr.mxu0 0.0
        %1040 = vmatpush1.msra.mxu0 0.0
        %1041 = vmatprep.subr.mxu0 0.0
        %1042 = vmatpush1.msra.mxu0 0.0
        %1043 = vmatprep.subr.mxu0 0.0
        %1044 = vmatpush1.msra.mxu0 0.0
        %1045 = vmatprep.subr.mxu0 0.0
        %1046 = vmatpush1.msra.mxu0 0.0
        %1047 = vmatprep.subr.mxu0 0.0
        %1048 = vmatpush1.msra.mxu0 0.0
        %1049 = vmatprep.subr.mxu0 0.0
        %1050 = vmatpush1.msra.mxu0 0.0
        %1051 = vmatprep.subr.mxu0 0.0
        %1052 = vmatpush1.msra.mxu0 0.0
        %1053 = vmatprep.subr.mxu0 0.0
        %1054 = vmatpush1.msra.mxu0 0.0
        %1055 = vmatprep.subr.mxu0 0.0
        %1056 = vmatpush1.msra.mxu0 0.0
        %1057 = vmatprep.subr.mxu0 0.0
        %1058 = vmatpush1.msra.mxu0 0.0
        %1059 = vmatprep.mubr.f32.mxu0 0.0
        %1060 = vmatmul.mubr.f32.gmra.mrb[0].mxu0 %v576
        %v1061 = vpop.f32.mrb[0].mxu0
        %v1062 = vadd.f32 %v571, %v1061
        %v1063 = vpop.f32.mrb[0].mxu0
        %v1064 = vadd.f32 %v571, %v1063
        %1065 = vdwg.mxu0
        %s1066 = scalar_lea.vmem %s417, 8 [#allocation7]
        %v1067 = vld [vmem:[%s1066] sm:$0xff]
        %v1069 = vcombine.high %v1067, %v1067
        %v1070 = vsel %vm491, %v1067, 0
        %v1072 = vsel %vm491, %v1069, 0
        %1074 = vmatprep.subr.mxu0 %v1072
        %1075 = vmatpush1.msra.mxu0 %v1070
        %1076 = vmatprep.subr.mxu0 0.0
        %1077 = vmatpush1.msra.mxu0 0.0
        %1078 = vmatprep.subr.mxu0 0.0
        %1079 = vmatpush1.msra.mxu0 0.0
        %1080 = vmatprep.subr.mxu0 0.0
        %1081 = vmatpush1.msra.mxu0 0.0
        %1082 = vmatprep.subr.mxu0 0.0
        %1083 = vmatpush1.msra.mxu0 0.0
        %1084 = vmatprep.subr.mxu0 0.0
        %1085 = vmatpush1.msra.mxu0 0.0
        %1086 = vmatprep.subr.mxu0 0.0
        %1087 = vmatpush1.msra.mxu0 0.0
        %1088 = vmatprep.subr.mxu0 0.0
        %1089 = vmatpush1.msra.mxu0 0.0
        %1090 = vmatprep.subr.mxu0 0.0
        %1091 = vmatpush1.msra.mxu0 0.0
        %1092 = vmatprep.subr.mxu0 0.0
        %1093 = vmatpush1.msra.mxu0 0.0
        %1094 = vmatprep.subr.mxu0 0.0
        %1095 = vmatpush1.msra.mxu0 0.0
        %1096 = vmatprep.subr.mxu0 0.0
        %1097 = vmatpush1.msra.mxu0 0.0
        %1098 = vmatprep.subr.mxu0 0.0
        %1099 = vmatpush1.msra.mxu0 0.0
        %1100 = vmatprep.subr.mxu0 0.0
        %1101 = vmatpush1.msra.mxu0 0.0
        %1102 = vmatprep.subr.mxu0 0.0
        %1103 = vmatpush1.msra.mxu0 0.0
        %1104 = vmatprep.subr.mxu0 0.0
        %1105 = vmatpush1.msra.mxu0 0.0
        %1106 = vmatprep.subr.mxu0 0.0
        %1107 = vmatpush1.msra.mxu0 0.0
        %1108 = vmatprep.subr.mxu0 0.0
        %1109 = vmatpush1.msra.mxu0 0.0
        %1110 = vmatprep.subr.mxu0 0.0
        %1111 = vmatpush1.msra.mxu0 0.0
        %1112 = vmatprep.subr.mxu0 0.0
        %1113 = vmatpush1.msra.mxu0 0.0
        %1114 = vmatprep.subr.mxu0 0.0
        %1115 = vmatpush1.msra.mxu0 0.0
        %1116 = vmatprep.subr.mxu0 0.0
        %1117 = vmatpush1.msra.mxu0 0.0
        %1118 = vmatprep.subr.mxu0 0.0
        %1119 = vmatpush1.msra.mxu0 0.0
        %1120 = vmatprep.subr.mxu0 0.0
        %1121 = vmatpush1.msra.mxu0 0.0
        %1122 = vmatprep.subr.mxu0 0.0
        %1123 = vmatpush1.msra.mxu0 0.0
        %1124 = vmatprep.subr.mxu0 0.0
        %1125 = vmatpush1.msra.mxu0 0.0
        %1126 = vmatprep.subr.mxu0 0.0
        %1127 = vmatpush1.msra.mxu0 0.0
        %1128 = vmatprep.subr.mxu0 0.0
        %1129 = vmatpush1.msra.mxu0 0.0
        %1130 = vmatprep.subr.mxu0 0.0
        %1131 = vmatpush1.msra.mxu0 0.0
        %1132 = vmatprep.subr.mxu0 0.0
        %1133 = vmatpush1.msra.mxu0 0.0
        %1134 = vmatprep.subr.mxu0 0.0
        %1135 = vmatpush1.msra.mxu0 0.0
        %1136 = vmatprep.subr.mxu0 0.0
        %1137 = vmatpush1.msra.mxu0 0.0
        %1138 = vmatprep.mubr.f32.mxu0 0.0
        %1139 = vmatmul.mubr.f32.gmra.mrb[0].mxu0 %v662
        %v1140 = vpop.f32.mrb[0].mxu0
        %v1141 = vadd.f32 %v657, %v1140
        %v1142 = vpop.f32.mrb[0].mxu0
        %v1143 = vadd.f32 %v657, %v1142
        %1144 = vdwg.mxu0
        %1145 = vmatprep.subr.mxu0 %v1064
        %1146 = vmatpush1.xpose.msra.mxu0 %v1062
        %1147 = vmatprep.subr.mxu0 0.0
        %1148 = vmatpush1.xpose.msra.mxu0 0.0
        %1149 = vmatprep.subr.mxu0 0.0
        %1150 = vmatpush1.xpose.msra.mxu0 0.0
        %1151 = vmatprep.subr.mxu0 0.0
        %1152 = vmatpush1.xpose.msra.mxu0 0.0
        %1153 = vmatprep.subr.mxu0 0.0
        %1154 = vmatpush1.xpose.msra.mxu0 0.0
        %1155 = vmatprep.subr.mxu0 0.0
        %1156 = vmatpush1.xpose.msra.mxu0 0.0
        %1157 = vmatprep.subr.mxu0 0.0
        %1158 = vmatpush1.xpose.msra.mxu0 0.0
        %1159 = vmatprep.subr.mxu0 0.0
        %1160 = vmatpush1.xpose.msra.mxu0 0.0
        %1161 = vmatprep.subr.mxu0 0.0
        %1162 = vmatpush1.xpose.msra.mxu0 0.0
        %1163 = vmatprep.subr.mxu0 0.0
        %1164 = vmatpush1.xpose.msra.mxu0 0.0
        %1165 = vmatprep.subr.mxu0 0.0
        %1166 = vmatpush1.xpose.msra.mxu0 0.0
        %1167 = vmatprep.subr.mxu0 0.0
        %1168 = vmatpush1.xpose.msra.mxu0 0.0
        %1169 = vmatprep.subr.mxu0 0.0
        %1170 = vmatpush1.xpose.msra.mxu0 0.0
        %1171 = vmatprep.subr.mxu0 0.0
        %1172 = vmatpush1.xpose.msra.mxu0 0.0
        %1173 = vmatprep.subr.mxu0 0.0
        %1174 = vmatpush1.xpose.msra.mxu0 0.0
        %1175 = vmatprep.subr.mxu0 0.0
        %1176 = vmatpush1.xpose.msra.mxu0 0.0
        %1177 = vmatprep.subr.mxu0 0.0
        %1178 = vmatpush1.xpose.msra.mxu0 0.0
        %1179 = vmatprep.subr.mxu0 0.0
        %1180 = vmatpush1.xpose.msra.mxu0 0.0
        %1181 = vmatprep.subr.mxu0 0.0
        %1182 = vmatpush1.xpose.msra.mxu0 0.0
        %1183 = vmatprep.subr.mxu0 0.0
        %1184 = vmatpush1.xpose.msra.mxu0 0.0
        %1185 = vmatprep.subr.mxu0 0.0
        %1186 = vmatpush1.xpose.msra.mxu0 0.0
        %1187 = vmatprep.subr.mxu0 0.0
        %1188 = vmatpush1.xpose.msra.mxu0 0.0
        %1189 = vmatprep.subr.mxu0 0.0
        %1190 = vmatpush1.xpose.msra.mxu0 0.0
        %1191 = vmatprep.subr.mxu0 0.0
        %1192 = vmatpush1.xpose.msra.mxu0 0.0
        %1193 = vmatprep.subr.mxu0 0.0
        %1194 = vmatpush1.xpose.msra.mxu0 0.0
        %1195 = vmatprep.subr.mxu0 0.0
        %1196 = vmatpush1.xpose.msra.mxu0 0.0
        %1197 = vmatprep.subr.mxu0 0.0
        %1198 = vmatpush1.xpose.msra.mxu0 0.0
        %1199 = vmatprep.subr.mxu0 0.0
        %1200 = vmatpush1.xpose.msra.mxu0 0.0
        %1201 = vmatprep.subr.mxu0 0.0
        %1202 = vmatpush1.xpose.msra.mxu0 0.0
        %1203 = vmatprep.subr.mxu0 0.0
        %1204 = vmatpush1.xpose.msra.mxu0 0.0
        %1205 = vmatprep.subr.mxu0 0.0
        %1206 = vmatpush1.xpose.msra.mxu0 0.0
        %1207 = vmatprep.subr.mxu0 0.0
        %1208 = vmatpush1.xpose.msra.mxu0 0.0
        %1209 = vmatprep.mubr.f32.mxu0 %v985
        %1210 = vmatmul.mubr.f32.gmra.mrb[0].mxu0 %v983
        %v1211 = vpop.f32.mrb[0].mxu0
        %v1212 = vadd.f32 0.0, %v1211
        %v1213 = vpop.f32.mrb[0].mxu0
        %1214 = vdwg.mxu0
        %v1215 = vmul.f32 %v1212, 0.0625
        %v1216 = vsel %vm810, %v1215, -inf
        %1217 = vmax.xlane.f32.xlu0 %v1216
        %v1218 = vpop.xlane.xlu0 %1217
        %v1219 = vsub.f32 %v1215, %v1218
        %v1220 = vmul.f32 %v1219, 1.442695
        %v1221 = vpow.pop %v1220
        %v1222 = vsel %vm810, %v1221, 0.0
        %1223 = vadd.xlane.f32.xlu0 %v1222
        %v1224 = vpop.xlane.xlu0 %1223
        %v1225 = vrcp.pop %v1224
        %v1226 = vmul.f32 %v1221, %v1225
        %v1228 = vsel %vm487, %v1226, 0
        %v1231 = vsel %vm491, %v1141, 0
        %v1234 = vsel %vm491, %v1143, 0
        %1236 = vmatprep.subr.mxu0 %v1234
        %1237 = vmatpush1.msra.mxu0 %v1231
        %1238 = vmatprep.subr.mxu0 0.0
        %1239 = vmatpush1.msra.mxu0 0.0
        %1240 = vmatprep.subr.mxu0 0.0
        %1241 = vmatpush1.msra.mxu0 0.0
        %1242 = vmatprep.subr.mxu0 0.0
        %1243 = vmatpush1.msra.mxu0 0.0
        %1244 = vmatprep.subr.mxu0 0.0
        %1245 = vmatpush1.msra.mxu0 0.0
        %1246 = vmatprep.subr.mxu0 0.0
        %1247 = vmatpush1.msra.mxu0 0.0
        %1248 = vmatprep.subr.mxu0 0.0
        %1249 = vmatpush1.msra.mxu0 0.0
        %1250 = vmatprep.subr.mxu0 0.0
        %1251 = vmatpush1.msra.mxu0 0.0
        %1252 = vmatprep.subr.mxu0 0.0
        %1253 = vmatpush1.msra.mxu0 0.0
        %1254 = vmatprep.subr.mxu0 0.0
        %1255 = vmatpush1.msra.mxu0 0.0
        %1256 = vmatprep.subr.mxu0 0.0
        %1257 = vmatpush1.msra.mxu0 0.0
        %1258 = vmatprep.subr.mxu0 0.0
        %1259 = vmatpush1.msra.mxu0 0.0
        %1260 = vmatprep.subr.mxu0 0.0
        %1261 = vmatpush1.msra.mxu0 0.0
        %1262 = vmatprep.subr.mxu0 0.0
        %1263 = vmatpush1.msra.mxu0 0.0
        %1264 = vmatprep.subr.mxu0 0.0
        %1265 = vmatpush1.msra.mxu0 0.0
        %1266 = vmatprep.subr.mxu0 0.0
        %1267 = vmatpush1.msra.mxu0 0.0
        %1268 = vmatprep.subr.mxu0 0.0
        %1269 = vmatpush1.msra.mxu0 0.0
        %1270 = vmatprep.subr.mxu0 0.0
        %1271 = vmatpush1.msra.mxu0 0.0
        %1272 = vmatprep.subr.mxu0 0.0
        %1273 = vmatpush1.msra.mxu0 0.0
        %1274 = vmatprep.subr.mxu0 0.0
        %1275 = vmatpush1.msra.mxu0 0.0
        %1276 = vmatprep.subr.mxu0 0.0
        %1277 = vmatpush1.msra.mxu0 0.0
        %1278 = vmatprep.subr.mxu0 0.0
        %1279 = vmatpush1.msra.mxu0 0.0
        %1280 = vmatprep.subr.mxu0 0.0
        %1281 = vmatpush1.msra.mxu0 0.0
        %1282 = vmatprep.subr.mxu0 0.0
        %1283 = vmatpush1.msra.mxu0 0.0
        %1284 = vmatprep.subr.mxu0 0.0
        %1285 = vmatpush1.msra.mxu0 0.0
        %1286 = vmatprep.subr.mxu0 0.0
        %1287 = vmatpush1.msra.mxu0 0.0
        %1288 = vmatprep.subr.mxu0 0.0
        %1289 = vmatpush1.msra.mxu0 0.0
        %1290 = vmatprep.subr.mxu0 0.0
        %1291 = vmatpush1.msra.mxu0 0.0
        %1292 = vmatprep.subr.mxu0 0.0
        %1293 = vmatpush1.msra.mxu0 0.0
        %1294 = vmatprep.subr.mxu0 0.0
        %1295 = vmatpush1.msra.mxu0 0.0
        %1296 = vmatprep.subr.mxu0 0.0
        %1297 = vmatpush1.msra.mxu0 0.0
        %1298 = vmatprep.subr.mxu0 0.0
        %1299 = vmatpush1.msra.mxu0 0.0
        %1300 = vmatprep.mubr.f32.mxu0 0.0
        %1301 = vmatmul.mubr.f32.gmra.mrb[0].mxu0 %v1228
        %v1302 = vpop.f32.mrb[0].mxu0
        %v1303 = vadd.f32 0.0, %v1302
        %v1304 = vpop.f32.mrb[0].mxu0
        %v1305 = vadd.f32 0.0, %v1304
        %1306 = vdwg.mxu0
        %v1309 = vcombine.low %v1303, %v1305
        %s1311 = scalar_lea.vmem %s461, 8 [#allocation8]
        %1312 = vst [vmem:[%s1311] sm:$0xff] %v1309
        %1313 = vrot.lane.b32.xlu0 %v1226, 4
        %v1314 = vpop.permute.xlu0 %1313
        %vm1316 = vcmask 60448
        %1317 = vst.msk [vmem:[%s468] sm:$0xf] %vm1316, %v1314
        %s1318 = sand.u32 %s246, 1
        %s1319 = scalar_lea.sflag [#allocation4], %s1318
        %s1320 = sand.u32 %s246, 1
        %s1321 = smul.addr %s1320, 16
        %s1322 = scalar_lea.vmem [#allocation8], %s1321
        %s1323 = sand.u32 %s272, 1
        %s1324 = scalar_lea.sflag [#allocation10], %s1323
        %s1325 = sand.u32 %s272, 1
        %s1326 = smul.addr %s1325, 4
        %s1327 = scalar_lea.vmem [#allocation9], %s1326
        // Predicated region
        $region69: #{tpu_custom_call.1} parent=55 // pred_check
          %p1328 = pneg %p256
        $region70: #{tpu_custom_call.1} parent=55 // pred_check_branch
          %1330 = sbr.rel (%p1328) target = $region72
        $region71: #{tpu_custom_call.1} parent=55 // pred_region
          %s1331 = smul.u32 2, %s34
          %s1333 = ssub.s32 256, 256
          %1334 = vsyncadd %s1319, %s1333
          %s1335 = smul.addr %s1331, 2
          %s1336 = smul.addr %s1335, 64
          %s1337 = scalar_lea.hbm %s9, %s1336
          %s1338 = sshll.u32 %s1322, 4
          %s1339 = int_to_ptr.vmem [resolvable:$true] %s1338
          %1344 = dma.vmem_to_hbm [thread:$0]  %s1339, 256, %s1337, %s1319, 128, 128, 8
        $region72: #{tpu_custom_call.1} parent=55 // pred_fallthru
          _
        // Predicated region
        $region73: #{tpu_custom_call.1} parent=55 // pred_check
          %p1345 = pneg %p282
        $region74: #{tpu_custom_call.1} parent=55 // pred_check_branch
          %1347 = sbr.rel (%p1345) target = $region76
        $region75: #{tpu_custom_call.1} parent=55 // pred_region
          %s1349 = ssub.s32 64, 64
          %1350 = vsyncadd %s1324, %s1349
          %s1351 = smul.addr %s34, 64
          %s1352 = scalar_lea.hbm %s10, %s1351
          %s1354 = sshll.u32 %s1327, 4
          %s1355 = int_to_ptr.vmem [resolvable:$true] %s1354
          %1357 = dma.vmem_to_hbm [thread:$0]  %s1355, 64, %s1352, %s1324
        $region76: #{tpu_custom_call.1} parent=55 // pred_fallthru
          _
      $region56: #{tpu_custom_call.1} parent=5 // pred_fallthru
        _
      %p1358 = scmp.le.s32.totalorder 2, %s29
      // Predicated region
      $region77: #{tpu_custom_call.1} parent=5 // pred_check
        %p1359 = pneg %p1358
      $region78: #{tpu_custom_call.1} parent=5 // pred_check_branch
        %1361 = sbr.rel (%p1359) target = $region80
      $region79: #{tpu_custom_call.1} parent=5 // pred_region
        %s1362 = ssub.s32 %s29, 2
        // Predicated region
        $region81: #{tpu_custom_call.1} parent=79 // pred_check
          %p1363 = pneg %p262
        $region82: #{tpu_custom_call.1} parent=79 // pred_check_branch
          %1365 = sbr.rel (%p1363) target = $region84
        $region83: #{tpu_custom_call.1} parent=79 // pred_region
          %s1366 = sand.u32 %s247, 1
          %s1367 = scalar_lea.sflag [#allocation4], %s1366
          %s1368 = sand.u32 %s247, 1
          %s1369 = smul.addr %s1368, 16
          %s1370 = scalar_lea.vmem [#allocation8], %s1369
          %1371 = dma.done %s1367, 256
        $region84: #{tpu_custom_call.1} parent=79 // pred_fallthru
          _
        // Predicated region
        $region85: #{tpu_custom_call.1} parent=79 // pred_check
          %p1372 = pneg %p288
        $region86: #{tpu_custom_call.1} parent=79 // pred_check_branch
          %1374 = sbr.rel (%p1372) target = $region88
        $region87: #{tpu_custom_call.1} parent=79 // pred_region
          %s1375 = sand.u32 %s273, 1
          %s1376 = scalar_lea.sflag [#allocation10], %s1375
          %s1377 = sand.u32 %s273, 1
          %s1378 = smul.addr %s1377, 4
          %s1379 = scalar_lea.vmem [#allocation9], %s1378
          %1380 = dma.done %s1376, 64
        $region88: #{tpu_custom_call.1} parent=79 // pred_fallthru
          _
      $region80: #{tpu_custom_call.1} parent=5 // pred_fallthru
        _
    $region6: #{tpu_custom_call.1} parent=1 // loop_footer
      %s33 = sadd.s32 1, %s29
    $region7: #{tpu_custom_call.1} parent=1 // loop_footer_branch
      %28 = sbr.rel target = $region3
    $region8: #{tpu_custom_call.1} parent=1 // loop_exit
      _
    %1381 = vsyncpa [#allocation3], 1
    %s1382 = scalar_lea.sflag [#allocation3], 1
    %1383 = vsyncpa %s1382, 1
    %1384 = vsyncpa [#allocation6], 1
    %s1385 = scalar_lea.sflag [#allocation6], 1
    %1386 = vsyncpa %s1385, 1
    %1387 = vsyncpa [#allocation4], 1
    %s1388 = scalar_lea.sflag [#allocation4], 1
    %1389 = vsyncpa %s1388, 1
    %1390 = vsyncpa [#allocation10], 1
    %s1391 = scalar_lea.sflag [#allocation10], 1
    %1392 = vsyncpa %s1391, 1

</llo_original>
